<compile_context>
chip_gen: v5e
topology: v5e:2x2
jax: 0.10.0
libtpu: 0.0.40
codegen_flags: <defaults>
</compile_context>

<pallas_src>
import functools

import jax
import jax.numpy as jnp
from jax.experimental import pallas as pl
from jax.experimental.pallas import tpu as pltpu


def _vmem_limit_bytes():
    """Per-generation scoped-VMEM budget with headroom for compiler scratch/semaphores."""
    try:
        cap = int(pltpu.get_tpu_info().vmem_capacity_bytes)
    except Exception:
        cap = 64 * 1024 * 1024  # conservative fallback (v7x-sized)
    return int(min(cap - 16 * 1024 * 1024, 100 * 1024 * 1024))


_VMEM_LIMIT = _vmem_limit_bytes()


def _sublane_align(dtype):
    return {1: 32, 2: 16, 4: 8}.get(jnp.dtype(dtype).itemsize, 8)


def _pick_tile(dim, target, align):
    """Largest tile <= target that divides `dim` and is a multiple of `align`.
    Falls back to the full dim (always a legal block size)."""
    if dim <= target:
        return dim
    t = (min(target, dim) // align) * align
    while t >= align:
        if dim % t == 0:
            return t
        t -= align
    return dim


# -------------------- shared multi-head attention + out-proj + LN core --------------------

def _mha_epilogue(x, ctx_s, wo_ref, bo_ref, g_ref, beta_ref, o_ref, eps):
    """Single full-depth out-projection over all heads + residual + LayerNorm (f32 math)."""
    out = jnp.dot(ctx_s[...].astype(wo_ref.dtype), wo_ref[...],
                  preferred_element_type=jnp.float32) + bo_ref[...].astype(jnp.float32)
    z = x.astype(jnp.float32) + out
    mu = jnp.mean(z, axis=-1, keepdims=True)
    var = jnp.mean((z - mu) ** 2, axis=-1, keepdims=True)
    norm = (z - mu) * jax.lax.rsqrt(var + eps)
    o_ref[0] = (norm * g_ref[...].astype(jnp.float32)
                + beta_ref[...].astype(jnp.float32)).astype(o_ref.dtype)


def _head_sdpa(qh, kh, vh, scale, keep):
    """One head of scaled-dot-product attention; normalization applied after PV."""
    s = jax.lax.dot_general(qh, kh, (((1,), (1,)), ((), ())),
                            preferred_element_type=jnp.float32) * scale
    if keep is not None:
        s = jnp.where(keep, s, -jnp.inf)
    m = jnp.max(s, axis=-1, keepdims=True)
    p = jnp.exp(s - m)
    l = jnp.sum(p, axis=-1, keepdims=True)
    ctx = jnp.dot(p.astype(vh.dtype), vh, preferred_element_type=jnp.float32)
    return ctx * pl.reciprocal(l, approx=True)          # EUP slot; Lq*E multiplies


# ------------------ self-attention: QKV proj + causal MHA + out-proj + LN1 ----------------

def _self_attn_kernel(x_ref, wqkv_ref, bqkv_ref, wo_ref, bo_ref, g_ref, beta_ref,
                      o_ref, qkv_s, ctx_s, *, n_heads, d_model, eps):
    D = d_model
    e = D // n_heads
    L = x_ref.shape[1]
    scale = 1.0 / (float(e) ** 0.5)

    x = x_ref[0]                                               # [L, D]
    # fused QKV projection: one full-width MXU matmul, kept in VMEM scratch (no HBM round-trip)
    qkv = jnp.dot(x, wqkv_ref[...], preferred_element_type=jnp.float32)
    qkv_s[...] = (qkv + bqkv_ref[...].astype(jnp.float32)).astype(qkv_s.dtype)

    # causal mask
    row = jax.lax.broadcasted_iota(jnp.int32, (L, L), 0)
    col = jax.lax.broadcasted_iota(jnp.int32, (L, L), 1)
    keep = col <= row

    # head loop: static lane slices; per-head ctx written into the [L, D] slab
    for h in range(n_heads):
        qh = qkv_s[:, h * e:(h + 1) * e]
        kh = qkv_s[:, D + h * e:D + (h + 1) * e]
        vh = qkv_s[:, 2 * D + h * e:2 * D + (h + 1) * e]
        ctx_s[:, h * e:(h + 1) * e] = _head_sdpa(qh, kh, vh, scale, keep)

    _mha_epilogue(x, ctx_s, wo_ref, bo_ref, g_ref, beta_ref, o_ref, eps)


def self_attention_block(x, w_qkv, b_qkv, wo, bo, gamma, beta, n_heads, eps=1e-5):
    """LayerNorm(x + SDPA_causal(x@Wq, x@Wk, x@Wv) @ Wo); all projections fused in-kernel."""
    B, L, D = x.shape
    return pl.pallas_call(
        functools.partial(_self_attn_kernel, n_heads=n_heads, d_model=D, eps=eps),
        out_shape=jax.ShapeDtypeStruct((B, L, D), x.dtype),
        grid=(B,),
        in_specs=[
            pl.BlockSpec((1, L, D), lambda b: (b, 0, 0)),
            pl.BlockSpec((D, 3 * D), lambda b: (0, 0)),
            pl.BlockSpec((1, 3 * D), lambda b: (0, 0)),
            pl.BlockSpec((D, D), lambda b: (0, 0)),
            pl.BlockSpec((1, D), lambda b: (0, 0)),
            pl.BlockSpec((1, D), lambda b: (0, 0)),
            pl.BlockSpec((1, D), lambda b: (0, 0)),
        ],
        out_specs=pl.BlockSpec((1, L, D), lambda b: (b, 0, 0)),
        scratch_shapes=[
            pltpu.VMEM((L, 3 * D), x.dtype),       # projected Q|K|V
            pltpu.VMEM((L, D), jnp.float32),       # per-head context slab
        ],
        compiler_params=pltpu.CompilerParams(
            dimension_semantics=("parallel",),
            vmem_limit_bytes=_VMEM_LIMIT,
        ),
    )(x, w_qkv, b_qkv.reshape(1, 3 * D), wo, bo.reshape(1, D),
      gamma.reshape(1, D), beta.reshape(1, D))


# ---------------- cross-attention: Q/KV proj + MHA + out-proj + LN2 (unmasked) ------------

def _cross_attn_kernel(x_ref, cross_ref, wq_ref, bq_ref, wkv_ref, bkv_ref,
                       wo_ref, bo_ref, g_ref, beta_ref, o_ref,
                       q_s, kv_s, ctx_s, *, n_heads, d_model, eps):
    D = d_model
    e = D // n_heads
    scale = 1.0 / (float(e) ** 0.5)

    x = x_ref[0]                                               # [Lq, D]
    c = cross_ref[0]                                           # [Lk, D]
    q_s[...] = (jnp.dot(x, wq_ref[...], preferred_element_type=jnp.float32)
                + bq_ref[...].astype(jnp.float32)).astype(q_s.dtype)
    kv_s[...] = (jnp.dot(c, wkv_ref[...], preferred_element_type=jnp.float32)
                 + bkv_ref[...].astype(jnp.float32)).astype(kv_s.dtype)

    for h in range(n_heads):
        qh = q_s[:, h * e:(h + 1) * e]
        kh = kv_s[:, h * e:(h + 1) * e]
        vh = kv_s[:, D + h * e:D + (h + 1) * e]
        ctx_s[:, h * e:(h + 1) * e] = _head_sdpa(qh, kh, vh, scale, None)

    _mha_epilogue(x, ctx_s, wo_ref, bo_ref, g_ref, beta_ref, o_ref, eps)


def cross_attention_block(x, cross, wq, bq, w_kv, b_kv, wo, bo, gamma, beta,
                          n_heads, eps=1e-5):
    """LayerNorm(x + SDPA(x@Wq, cross@Wk, cross@Wv) @ Wo); projections fused in-kernel."""
    B, Lq, D = x.shape
    Lk = cross.shape[1]
    return pl.pallas_call(
        functools.partial(_cross_attn_kernel, n_heads=n_heads, d_model=D, eps=eps),
        out_shape=jax.ShapeDtypeStruct((B, Lq, D), x.dtype),
        grid=(B,),
        in_specs=[
            pl.BlockSpec((1, Lq, D), lambda b: (b, 0, 0)),
            pl.BlockSpec((1, Lk, D), lambda b: (b, 0, 0)),
            pl.BlockSpec((D, D), lambda b: (0, 0)),
            pl.BlockSpec((1, D), lambda b: (0, 0)),
            pl.BlockSpec((D, 2 * D), lambda b: (0, 0)),
            pl.BlockSpec((1, 2 * D), lambda b: (0, 0)),
            pl.BlockSpec((D, D), lambda b: (0, 0)),
            pl.BlockSpec((1, D), lambda b: (0, 0)),
            pl.BlockSpec((1, D), lambda b: (0, 0)),
            pl.BlockSpec((1, D), lambda b: (0, 0)),
        ],
        out_specs=pl.BlockSpec((1, Lq, D), lambda b: (b, 0, 0)),
        scratch_shapes=[
            pltpu.VMEM((Lq, D), x.dtype),           # projected Q
            pltpu.VMEM((Lk, 2 * D), x.dtype),       # projected K|V
            pltpu.VMEM((Lq, D), jnp.float32),       # per-head context slab
        ],
        compiler_params=pltpu.CompilerParams(
            dimension_semantics=("parallel",),
            vmem_limit_bytes=_VMEM_LIMIT,
        ),
    )(x, cross, wq, bq.reshape(1, D), w_kv, b_kv.reshape(1, 2 * D),
      wo, bo.reshape(1, D), gamma.reshape(1, D), beta.reshape(1, D))


# ------------------- fused FFN (conv1x1 -> relu -> conv1x1) + residual + LN3 ---------------

def _ffn_ln_kernel(x_ref, w1_ref, b1_ref, w2_ref, b2_ref, g_ref, bb_ref, o_ref, *, eps):
    x = x_ref[...]                                              # [tm, D]
    h = jnp.dot(x, w1_ref[...], preferred_element_type=jnp.float32)
    h = jnp.maximum(h + b1_ref[...].astype(jnp.float32), 0.0)
    y = jnp.dot(h.astype(x.dtype), w2_ref[...],
                preferred_element_type=jnp.float32)
    y = y + b2_ref[...].astype(jnp.float32)
    z = x.astype(jnp.float32) + y
    mu = jnp.mean(z, axis=-1, keepdims=True)
    var = jnp.mean((z - mu) ** 2, axis=-1, keepdims=True)
    norm = (z - mu) * jax.lax.rsqrt(var + eps)
    o_ref[...] = (norm * g_ref[...].astype(jnp.float32)
                  + bb_ref[...].astype(jnp.float32)).astype(o_ref.dtype)


def ffn_layernorm(x2d, w1, b1, w2, b2, gamma, beta, eps=1e-5, *, tm=256):
    """LayerNorm(x + relu(x @ w1 + b1) @ w2 + b2), row-tiled over B*L; weights VMEM-resident."""
    M, D = x2d.shape
    Dff = w1.shape[1]
    tm = _pick_tile(M, tm, _sublane_align(x2d.dtype))
    # TODO(synk): tile the d_ff axis (as an "arbitrary" grid axis with an f32 accumulator)
    #             when D*Dff weight residency would not fit v7x's 64 MiB VMEM.
    return pl.pallas_call(
        functools.partial(_ffn_ln_kernel, eps=eps),
        out_shape=jax.ShapeDtypeStruct((M, D), x2d.dtype),
        grid=(M // tm,),
        in_specs=[
            pl.BlockSpec((tm, D), lambda i: (i, 0)),
            pl.BlockSpec((D, Dff), lambda i: (0, 0)),
            pl.BlockSpec((1, Dff), lambda i: (0, 0)),
            pl.BlockSpec((Dff, D), lambda i: (0, 0)),
            pl.BlockSpec((1, D), lambda i: (0, 0)),
            pl.BlockSpec((1, D), lambda i: (0, 0)),
            pl.BlockSpec((1, D), lambda i: (0, 0)),
        ],
        out_specs=pl.BlockSpec((tm, D), lambda i: (i, 0)),
        compiler_params=pltpu.CompilerParams(
            dimension_semantics=("parallel",),
            vmem_limit_bytes=_VMEM_LIMIT,
        ),
    )(x2d, w1, b1.reshape(1, Dff), w2, b2.reshape(1, D),
      gamma.reshape(1, D), beta.reshape(1, D))


# -------------------------------------- decoder layer --------------------------------------

def pack_decoder_params(p):
    """Pre-pack concatenated projection weights ONCE at init (no per-step HBM concat)."""
    sa, ca = p["self_attn"], p["cross_attn"]
    packed = dict(p)
    packed["self_attn"] = {
        "w_qkv": jnp.concatenate([sa["wq"], sa["wk"], sa["wv"]], axis=1),   # [D, 3D]
        "b_qkv": jnp.concatenate([sa["bq"], sa["bk"], sa["bv"]], axis=0),   # [3D]
        "wo": sa["wo"], "bo": sa["bo"],
    }
    packed["cross_attn"] = {
        "wq": ca["wq"], "bq": ca["bq"],
        "w_kv": jnp.concatenate([ca["wk"], ca["wv"]], axis=1),              # [D, 2D]
        "b_kv": jnp.concatenate([ca["bk"], ca["bv"]], axis=0),              # [2D]
        "wo": ca["wo"], "bo": ca["bo"],
    }
    return packed


def decoder_layer_forward(x, cross, packed_params, n_heads, eps=1e-5):
    B, L, D = x.shape
    sa, ca = packed_params["self_attn"], packed_params["cross_attn"]

    # self-attention block: fused QKV proj + causal MHA + out-proj + residual + LN1
    x = self_attention_block(x, sa["w_qkv"], sa["b_qkv"], sa["wo"], sa["bo"],
                             packed_params["ln1_g"], packed_params["ln1_b"], n_heads, eps)

    # cross-attention block: fused Q proj (x) / KV proj (cross) + MHA + out-proj + LN2
    x = cross_attention_block(x, cross, ca["wq"], ca["bq"], ca["w_kv"], ca["b_kv"],
                              ca["wo"], ca["bo"],
                              packed_params["ln2_g"], packed_params["ln2_b"], n_heads, eps)

    # FFN (pointwise conv -> relu -> pointwise conv) + residual + LN3, fully fused
    y = ffn_layernorm(x.reshape(B * L, D), packed_params["w1"], packed_params["b1"],
                      packed_params["w2"], packed_params["b2"],
                      packed_params["ln3_g"], packed_params["ln3_b"], eps)
    return y.reshape(B, L, D)


# -------------------------------------- pure-JAX reference ---------------------------------

def _ref_attention(x_q, x_kv, p, n_heads, causal):
    B, Lq, D = x_q.shape
    Lk = x_kv.shape[1]
    E = D // n_heads
    q = (x_q @ p["wq"] + p["bq"]).reshape(B, Lq, n_heads, E).transpose(0, 2, 1, 3)
    k = (x_kv @ p["wk"] + p["bk"]).reshape(B, Lk, n_heads, E).transpose(0, 2, 1, 3)
    v = (x_kv @ p["wv"] + p["bv"]).reshape(B, Lk, n_heads, E).transpose(0, 2, 1, 3)
    s = jnp.einsum("bhqe,bhke->bhqk", q, k) / float(E) ** 0.5
    if causal:
        mask = jnp.tril(jnp.ones((Lq, Lk), dtype=bool))
        s = jnp.where(mask, s, -jnp.inf)
    a = jax.nn.softmax(s, axis=-1)
    o = jnp.einsum("bhqk,bhke->bhqe", a, v).transpose(0, 2, 1, 3).reshape(B, Lq, D)
    return o @ p["wo"] + p["bo"]


def _ref_ln(z, g, b, eps=1e-5):
    mu = jnp.mean(z, axis=-1, keepdims=True)
    var = jnp.mean((z - mu) ** 2, axis=-1, keepdims=True)
    return (z - mu) / jnp.sqrt(var + eps) * g + b


def _ref_forward(x, cross, params, n_heads):
    x = _ref_ln(x + _ref_attention(x, x, params["self_attn"], n_heads, True),
                params["ln1_g"], params["ln1_b"])
    x = _ref_ln(x + _ref_attention(x, cross, params["cross_attn"], n_heads, False),
                params["ln2_g"], params["ln2_b"])
    y = jnp.maximum(x @ params["w1"] + params["b1"], 0.0) @ params["w2"] + params["b2"]
    return _ref_ln(x + y, params["ln3_g"], params["ln3_b"])


# ------------------------------------------- main ------------------------------------------

def make_params(key, d_model, d_ff, dtype=jnp.float32):
    ks = list(jax.random.split(key, 16))

    def lin(k, din, dout):
        return jax.random.normal(k, (din, dout), dtype) * 0.05

    def attn_params(k0, k1, k2, k3):
        return {
            "wq": lin(k0, d_model, d_model), "bq": jnp.zeros((d_model,), dtype),
            "wk": lin(k1, d_model, d_model), "bk": jnp.zeros((d_model,), dtype),
            "wv": lin(k2, d_model, d_model), "bv": jnp.zeros((d_model,), dtype),
            "wo": lin(k3, d_model, d_model), "bo": jnp.zeros((d_model,), dtype),
        }

    return {
        "self_attn": attn_params(*ks[0:4]),
        "cross_attn": attn_params(*ks[4:8]),
        "w1": lin(ks[8], d_model, d_ff), "b1": jnp.zeros((d_ff,), dtype),
        "w2": lin(ks[9], d_ff, d_model), "b2": jnp.zeros((d_model,), dtype),
        "ln1_g": jnp.ones((d_model,), dtype), "ln1_b": jnp.zeros((d_model,), dtype),
        "ln2_g": jnp.ones((d_model,), dtype), "ln2_b": jnp.zeros((d_model,), dtype),
        "ln3_g": jnp.ones((d_model,), dtype), "ln3_b": jnp.zeros((d_model,), dtype),
    }


if __name__ == "__main__":
    B, L, S, d_model, n_heads = 2, 8, 12, 32, 4
    d_ff = 4 * d_model

    key = jax.random.PRNGKey(0)
    kx, kc, kp = jax.random.split(key, 3)
    x = jax.random.normal(kx, (B, L, d_model), jnp.float32)
    cross = jax.random.normal(kc, (B, S, d_model), jnp.float32)
    params = make_params(kp, d_model, d_ff)
    kparams = pack_decoder_params(params)          # one-time weight packing at init

    fwd = jax.jit(functools.partial(decoder_layer_forward, n_heads=n_heads))
    out = jax.block_until_ready(fwd(x, cross, kparams))

    ref = _ref_forward(x, cross, params, n_heads)
    assert out.shape == (B, L, d_model)
    # Tolerance slightly relaxed vs f32-exact for the EUP approximate reciprocal in the
    # softmax normalization and f32-accumulation order differences.
    assert jnp.allclose(out, ref, rtol=5e-3, atol=5e-3), "mismatch vs. JAX reference"

    print("KERNEL_OK")
</pallas_src>

<mosaic_0001>
module attributes {stable_mosaic.version = 11 : i64} {
  func.func @_self_attn_kernel(%arg0: i32, %arg1: memref<1x8x32xf32, #tpu.memory_space<vmem>>, %arg2: memref<32x96xf32, #tpu.memory_space<vmem>>, %arg3: memref<1x96xf32, #tpu.memory_space<vmem>>, %arg4: memref<32x32xf32, #tpu.memory_space<vmem>>, %arg5: memref<1x32xf32, #tpu.memory_space<vmem>>, %arg6: memref<1x32xf32, #tpu.memory_space<vmem>>, %arg7: memref<1x32xf32, #tpu.memory_space<vmem>>, %arg8: memref<1x8x32xf32, #tpu.memory_space<vmem>>, %arg9: memref<8x96xf32, #tpu.memory_space<vmem>>, %arg10: memref<8x32xf32, #tpu.memory_space<vmem>>) attributes {dimension_semantics = [#tpu.dimension_semantics<parallel>], iteration_bounds = array<i64: 2>, scalar_prefetch = 0 : i64, scratch_operands = 2 : i64, tpu.core_type = #tpu.core_type<tc>, window_params = [{transform_indices = @transform_0, window_bounds = array<i64: 1, 8, 32>}, {pipeline_mode = #tpu.pipeline_mode<synchronous>, transform_indices = @transform_1, window_bounds = array<i64: 32, 96>}, {pipeline_mode = #tpu.pipeline_mode<synchronous>, transform_indices = @transform_2, window_bounds = array<i64: 1, 96>}, {pipeline_mode = #tpu.pipeline_mode<synchronous>, transform_indices = @transform_3, window_bounds = array<i64: 32, 32>}, {pipeline_mode = #tpu.pipeline_mode<synchronous>, transform_indices = @transform_4, window_bounds = array<i64: 1, 32>}, {pipeline_mode = #tpu.pipeline_mode<synchronous>, transform_indices = @transform_5, window_bounds = array<i64: 1, 32>}, {pipeline_mode = #tpu.pipeline_mode<synchronous>, transform_indices = @transform_6, window_bounds = array<i64: 1, 32>}, {transform_indices = @transform_7, window_bounds = array<i64: 1, 8, 32>}]} {
    %c0 = arith.constant 0 : index
    %c0_0 = arith.constant 0 : index
    %c0_1 = arith.constant 0 : index
    %0 = vector.load %arg1[%c0, %c0_0, %c0_1] : memref<1x8x32xf32, #tpu.memory_space<vmem>>, vector<1x8x32xf32>
    %1 = vector.shape_cast %0 : vector<1x8x32xf32> to vector<8x32xf32>
    %c0_2 = arith.constant 0 : index
    %c0_3 = arith.constant 0 : index
    %2 = vector.load %arg2[%c0_2, %c0_3] : memref<32x96xf32, #tpu.memory_space<vmem>>, vector<32x96xf32>
    %cst = arith.constant dense<0.000000e+00> : vector<8x96xf32>
    %3 = tpu.matmul %1, %2, %cst {dimension_numbers = #tpu.dot_dimension_numbers<[1], [0], [0], [1], [0, 0, 1, 1], [], []>} : vector<8x32xf32>, vector<32x96xf32>, vector<8x96xf32> -> vector<8x96xf32>
    %c0_4 = arith.constant 0 : index
    %c0_5 = arith.constant 0 : index
    %4 = vector.load %arg3[%c0_4, %c0_5] : memref<1x96xf32, #tpu.memory_space<vmem>>, vector<1x96xf32>
    %5 = vector.broadcast %4 : vector<1x96xf32> to vector<8x96xf32>
    %6 = arith.addf %3, %5 : vector<8x96xf32>
    %c0_6 = arith.constant 0 : index
    %c0_7 = arith.constant 0 : index
    %7 = vector.load %arg9[%c0_6, %c0_7] : memref<8x96xf32, #tpu.memory_space<vmem>>, vector<8x96xf32>
    tpu.vector_store %arg9[%c0_6, %c0_7], %6 {strides = array<i32>} : memref<8x96xf32, #tpu.memory_space<vmem>>, vector<8x96xf32>,
    %8 = tpu.iota {dimensions = array<i32: 0>} : vector<8x8xi32>
    %9 = tpu.iota {dimensions = array<i32: 1>} : vector<8x8xi32>
    %10 = arith.cmpi sle, %9, %8 : vector<8x8xi32>
    %c0_8 = arith.constant 0 : index
    %c0_9 = arith.constant 0 : index
    %11 = vector.load %arg9[%c0_8, %c0_9] : memref<8x96xf32, #tpu.memory_space<vmem>>, vector<8x8xf32>
    %c0_10 = arith.constant 0 : index
    %c32 = arith.constant 32 : index
    %12 = vector.load %arg9[%c0_10, %c32] : memref<8x96xf32, #tpu.memory_space<vmem>>, vector<8x8xf32>
    %c0_11 = arith.constant 0 : index
    %c64 = arith.constant 64 : index
    %13 = vector.load %arg9[%c0_11, %c64] : memref<8x96xf32, #tpu.memory_space<vmem>>, vector<8x8xf32>
    %cst_12 = arith.constant dense<0.000000e+00> : vector<8x8xf32>
    %14 = tpu.matmul %11, %12, %cst_12 {dimension_numbers = #tpu.dot_dimension_numbers<[1], [1], [0], [0], [0, 0, 1, 0], [], []>} : vector<8x8xf32>, vector<8x8xf32>, vector<8x8xf32> -> vector<8x8xf32>
    %cst_13 = arith.constant 0.353553385 : f32
    %15 = vector.broadcast %cst_13 : f32 to vector<8x8xf32>
    %16 = arith.mulf %14, %15 : vector<8x8xf32>
    %cst_14 = arith.constant 0xFF800000 : f32
    %17 = vector.broadcast %cst_14 : f32 to vector<8x8xf32>
    %18 = arith.select %10, %16, %17 : vector<8x8xi1>, vector<8x8xf32>
    %cst_15 = arith.constant dense<0xFF800000> : vector<8xf32>
    %19 = vector.multi_reduction <maximumf>, %18, %cst_15 [1] : vector<8x8xf32> to vector<8xf32>
    %20 = vector.shape_cast %19 : vector<8xf32> to vector<8x1xf32>
    %21 = vector.broadcast %20 : vector<8x1xf32> to vector<8x8xf32>
    %22 = arith.subf %18, %21 : vector<8x8xf32>
    %23 = math.exp %22 : vector<8x8xf32>
    %cst_16 = arith.constant dense<0.000000e+00> : vector<8xf32>
    %24 = vector.multi_reduction <add>, %23, %cst_16 [1] : vector<8x8xf32> to vector<8xf32>
    %25 = vector.shape_cast %24 : vector<8xf32> to vector<8x1xf32>
    %cst_17 = arith.constant dense<0.000000e+00> : vector<8x8xf32>
    %26 = tpu.matmul %23, %13, %cst_17 {dimension_numbers = #tpu.dot_dimension_numbers<[1], [0], [0], [1], [0, 0, 1, 1], [], []>} : vector<8x8xf32>, vector<8x8xf32>, vector<8x8xf32> -> vector<8x8xf32>
    %27 = tpu.reciprocal %25 {approx = true} : vector<8x1xf32> -> vector<8x1xf32>
    %28 = vector.broadcast %27 : vector<8x1xf32> to vector<8x8xf32>
    %29 = arith.mulf %26, %28 : vector<8x8xf32>
    %c0_18 = arith.constant 0 : index
    %c0_19 = arith.constant 0 : index
    %30 = vector.load %arg10[%c0_18, %c0_19] : memref<8x32xf32, #tpu.memory_space<vmem>>, vector<8x8xf32>
    tpu.vector_store %arg10[%c0_18, %c0_19], %29 {strides = array<i32>} : memref<8x32xf32, #tpu.memory_space<vmem>>, vector<8x8xf32>,
    %c0_20 = arith.constant 0 : index
    %c8 = arith.constant 8 : index
    %31 = vector.load %arg9[%c0_20, %c8] : memref<8x96xf32, #tpu.memory_space<vmem>>, vector<8x8xf32>
    %c0_21 = arith.constant 0 : index
    %c40 = arith.constant 40 : index
    %32 = vector.load %arg9[%c0_21, %c40] : memref<8x96xf32, #tpu.memory_space<vmem>>, vector<8x8xf32>
    %c0_22 = arith.constant 0 : index
    %c72 = arith.constant 72 : index
    %33 = vector.load %arg9[%c0_22, %c72] : memref<8x96xf32, #tpu.memory_space<vmem>>, vector<8x8xf32>
    %cst_23 = arith.constant dense<0.000000e+00> : vector<8x8xf32>
    %34 = tpu.matmul %31, %32, %cst_23 {dimension_numbers = #tpu.dot_dimension_numbers<[1], [1], [0], [0], [0, 0, 1, 0], [], []>} : vector<8x8xf32>, vector<8x8xf32>, vector<8x8xf32> -> vector<8x8xf32>
    %cst_24 = arith.constant 0.353553385 : f32
    %35 = vector.broadcast %cst_24 : f32 to vector<8x8xf32>
    %36 = arith.mulf %34, %35 : vector<8x8xf32>
    %cst_25 = arith.constant 0xFF800000 : f32
    %37 = vector.broadcast %cst_25 : f32 to vector<8x8xf32>
    %38 = arith.select %10, %36, %37 : vector<8x8xi1>, vector<8x8xf32>
    %cst_26 = arith.constant dense<0xFF800000> : vector<8xf32>
    %39 = vector.multi_reduction <maximumf>, %38, %cst_26 [1] : vector<8x8xf32> to vector<8xf32>
    %40 = vector.shape_cast %39 : vector<8xf32> to vector<8x1xf32>
    %41 = vector.broadcast %40 : vector<8x1xf32> to vector<8x8xf32>
    %42 = arith.subf %38, %41 : vector<8x8xf32>
    %43 = math.exp %42 : vector<8x8xf32>
    %cst_27 = arith.constant dense<0.000000e+00> : vector<8xf32>
    %44 = vector.multi_reduction <add>, %43, %cst_27 [1] : vector<8x8xf32> to vector<8xf32>
    %45 = vector.shape_cast %44 : vector<8xf32> to vector<8x1xf32>
    %cst_28 = arith.constant dense<0.000000e+00> : vector<8x8xf32>
    %46 = tpu.matmul %43, %33, %cst_28 {dimension_numbers = #tpu.dot_dimension_numbers<[1], [0], [0], [1], [0, 0, 1, 1], [], []>} : vector<8x8xf32>, vector<8x8xf32>, vector<8x8xf32> -> vector<8x8xf32>
    %47 = tpu.reciprocal %45 {approx = true} : vector<8x1xf32> -> vector<8x1xf32>
    %48 = vector.broadcast %47 : vector<8x1xf32> to vector<8x8xf32>
    %49 = arith.mulf %46, %48 : vector<8x8xf32>
    %c0_29 = arith.constant 0 : index
    %c8_30 = arith.constant 8 : index
    %50 = vector.load %arg10[%c0_29, %c8_30] : memref<8x32xf32, #tpu.memory_space<vmem>>, vector<8x8xf32>
    tpu.vector_store %arg10[%c0_29, %c8_30], %49 {strides = array<i32>} : memref<8x32xf32, #tpu.memory_space<vmem>>, vector<8x8xf32>,
    %c0_31 = arith.constant 0 : index
    %c16 = arith.constant 16 : index
    %51 = vector.load %arg9[%c0_31, %c16] : memref<8x96xf32, #tpu.memory_space<vmem>>, vector<8x8xf32>
    %c0_32 = arith.constant 0 : index
    %c48 = arith.constant 48 : index
    %52 = vector.load %arg9[%c0_32, %c48] : memref<8x96xf32, #tpu.memory_space<vmem>>, vector<8x8xf32>
    %c0_33 = arith.constant 0 : index
    %c80 = arith.constant 80 : index
    %53 = vector.load %arg9[%c0_33, %c80] : memref<8x96xf32, #tpu.memory_space<vmem>>, vector<8x8xf32>
    %cst_34 = arith.constant dense<0.000000e+00> : vector<8x8xf32>
    %54 = tpu.matmul %51, %52, %cst_34 {dimension_numbers = #tpu.dot_dimension_numbers<[1], [1], [0], [0], [0, 0, 1, 0], [], []>} : vector<8x8xf32>, vector<8x8xf32>, vector<8x8xf32> -> vector<8x8xf32>
    %cst_35 = arith.constant 0.353553385 : f32
    %55 = vector.broadcast %cst_35 : f32 to vector<8x8xf32>
    %56 = arith.mulf %54, %55 : vector<8x8xf32>
    %cst_36 = arith.constant 0xFF800000 : f32
    %57 = vector.broadcast %cst_36 : f32 to vector<8x8xf32>
    %58 = arith.select %10, %56, %57 : vector<8x8xi1>, vector<8x8xf32>
    %cst_37 = arith.constant dense<0xFF800000> : vector<8xf32>
    %59 = vector.multi_reduction <maximumf>, %58, %cst_37 [1] : vector<8x8xf32> to vector<8xf32>
    %60 = vector.shape_cast %59 : vector<8xf32> to vector<8x1xf32>
    %61 = vector.broadcast %60 : vector<8x1xf32> to vector<8x8xf32>
    %62 = arith.subf %58, %61 : vector<8x8xf32>
    %63 = math.exp %62 : vector<8x8xf32>
    %cst_38 = arith.constant dense<0.000000e+00> : vector<8xf32>
    %64 = vector.multi_reduction <add>, %63, %cst_38 [1] : vector<8x8xf32> to vector<8xf32>
    %65 = vector.shape_cast %64 : vector<8xf32> to vector<8x1xf32>
    %cst_39 = arith.constant dense<0.000000e+00> : vector<8x8xf32>
    %66 = tpu.matmul %63, %53, %cst_39 {dimension_numbers = #tpu.dot_dimension_numbers<[1], [0], [0], [1], [0, 0, 1, 1], [], []>} : vector<8x8xf32>, vector<8x8xf32>, vector<8x8xf32> -> vector<8x8xf32>
    %67 = tpu.reciprocal %65 {approx = true} : vector<8x1xf32> -> vector<8x1xf32>
    %68 = vector.broadcast %67 : vector<8x1xf32> to vector<8x8xf32>
    %69 = arith.mulf %66, %68 : vector<8x8xf32>
    %c0_40 = arith.constant 0 : index
    %c16_41 = arith.constant 16 : index
    %70 = vector.load %arg10[%c0_40, %c16_41] : memref<8x32xf32, #tpu.memory_space<vmem>>, vector<8x8xf32>
    tpu.vector_store %arg10[%c0_40, %c16_41], %69 {strides = array<i32>} : memref<8x32xf32, #tpu.memory_space<vmem>>, vector<8x8xf32>,
    %c0_42 = arith.constant 0 : index
    %c24 = arith.constant 24 : index
    %71 = vector.load %arg9[%c0_42, %c24] : memref<8x96xf32, #tpu.memory_space<vmem>>, vector<8x8xf32>
    %c0_43 = arith.constant 0 : index
    %c56 = arith.constant 56 : index
    %72 = vector.load %arg9[%c0_43, %c56] : memref<8x96xf32, #tpu.memory_space<vmem>>, vector<8x8xf32>
    %c0_44 = arith.constant 0 : index
    %c88 = arith.constant 88 : index
    %73 = vector.load %arg9[%c0_44, %c88] : memref<8x96xf32, #tpu.memory_space<vmem>>, vector<8x8xf32>
    %cst_45 = arith.constant dense<0.000000e+00> : vector<8x8xf32>
    %74 = tpu.matmul %71, %72, %cst_45 {dimension_numbers = #tpu.dot_dimension_numbers<[1], [1], [0], [0], [0, 0, 1, 0], [], []>} : vector<8x8xf32>, vector<8x8xf32>, vector<8x8xf32> -> vector<8x8xf32>
    %cst_46 = arith.constant 0.353553385 : f32
    %75 = vector.broadcast %cst_46 : f32 to vector<8x8xf32>
    %76 = arith.mulf %74, %75 : vector<8x8xf32>
    %cst_47 = arith.constant 0xFF800000 : f32
    %77 = vector.broadcast %cst_47 : f32 to vector<8x8xf32>
    %78 = arith.select %10, %76, %77 : vector<8x8xi1>, vector<8x8xf32>
    %cst_48 = arith.constant dense<0xFF800000> : vector<8xf32>
    %79 = vector.multi_reduction <maximumf>, %78, %cst_48 [1] : vector<8x8xf32> to vector<8xf32>
    %80 = vector.shape_cast %79 : vector<8xf32> to vector<8x1xf32>
    %81 = vector.broadcast %80 : vector<8x1xf32> to vector<8x8xf32>
    %82 = arith.subf %78, %81 : vector<8x8xf32>
    %83 = math.exp %82 : vector<8x8xf32>
    %cst_49 = arith.constant dense<0.000000e+00> : vector<8xf32>
    %84 = vector.multi_reduction <add>, %83, %cst_49 [1] : vector<8x8xf32> to vector<8xf32>
    %85 = vector.shape_cast %84 : vector<8xf32> to vector<8x1xf32>
    %cst_50 = arith.constant dense<0.000000e+00> : vector<8x8xf32>
    %86 = tpu.matmul %83, %73, %cst_50 {dimension_numbers = #tpu.dot_dimension_numbers<[1], [0], [0], [1], [0, 0, 1, 1], [], []>} : vector<8x8xf32>, vector<8x8xf32>, vector<8x8xf32> -> vector<8x8xf32>
    %87 = tpu.reciprocal %85 {approx = true} : vector<8x1xf32> -> vector<8x1xf32>
    %88 = vector.broadcast %87 : vector<8x1xf32> to vector<8x8xf32>
    %89 = arith.mulf %86, %88 : vector<8x8xf32>
    %c0_51 = arith.constant 0 : index
    %c24_52 = arith.constant 24 : index
    %90 = vector.load %arg10[%c0_51, %c24_52] : memref<8x32xf32, #tpu.memory_space<vmem>>, vector<8x8xf32>
    tpu.vector_store %arg10[%c0_51, %c24_52], %89 {strides = array<i32>} : memref<8x32xf32, #tpu.memory_space<vmem>>, vector<8x8xf32>,
    %c0_53 = arith.constant 0 : index
    %c0_54 = arith.constant 0 : index
    %91 = vector.load %arg10[%c0_53, %c0_54] : memref<8x32xf32, #tpu.memory_space<vmem>>, vector<8x32xf32>
    %c0_55 = arith.constant 0 : index
    %c0_56 = arith.constant 0 : index
    %92 = vector.load %arg4[%c0_55, %c0_56] : memref<32x32xf32, #tpu.memory_space<vmem>>, vector<32x32xf32>
    %cst_57 = arith.constant dense<0.000000e+00> : vector<8x32xf32>
    %93 = tpu.matmul %91, %92, %cst_57 {dimension_numbers = #tpu.dot_dimension_numbers<[1], [0], [0], [1], [0, 0, 1, 1], [], []>} : vector<8x32xf32>, vector<32x32xf32>, vector<8x32xf32> -> vector<8x32xf32>
    %c0_58 = arith.constant 0 : index
    %c0_59 = arith.constant 0 : index
    %94 = vector.load %arg5[%c0_58, %c0_59] : memref<1x32xf32, #tpu.memory_space<vmem>>, vector<1x32xf32>
    %95 = vector.broadcast %94 : vector<1x32xf32> to vector<8x32xf32>
    %96 = arith.addf %93, %95 : vector<8x32xf32>
    %97 = arith.addf %1, %96 : vector<8x32xf32>
    %cst_60 = arith.constant dense<0.000000e+00> : vector<8xf32>
    %98 = vector.multi_reduction <add>, %97, %cst_60 [1] : vector<8x32xf32> to vector<8xf32>
    %99 = vector.shape_cast %98 : vector<8xf32> to vector<8x1xf32>
    %cst_61 = arith.constant 3.200000e+01 : f32
    %100 = vector.broadcast %cst_61 : f32 to vector<8x1xf32>
    %101 = arith.divf %99, %100 : vector<8x1xf32>
    %102 = vector.broadcast %101 : vector<8x1xf32> to vector<8x32xf32>
    %103 = arith.subf %97, %102 : vector<8x32xf32>
    %104 = arith.mulf %103, %103 : vector<8x32xf32>
    %cst_62 = arith.constant dense<0.000000e+00> : vector<8xf32>
    %105 = vector.multi_reduction <add>, %104, %cst_62 [1] : vector<8x32xf32> to vector<8xf32>
    %106 = vector.shape_cast %105 : vector<8xf32> to vector<8x1xf32>
    %cst_63 = arith.constant 3.200000e+01 : f32
    %107 = vector.broadcast %cst_63 : f32 to vector<8x1xf32>
    %108 = arith.divf %106, %107 : vector<8x1xf32>
    %109 = vector.broadcast %101 : vector<8x1xf32> to vector<8x32xf32>
    %110 = arith.subf %97, %109 : vector<8x32xf32>
    %cst_64 = arith.constant 9.99999974E-6 : f32
    %111 = vector.broadcast %cst_64 : f32 to vector<8x1xf32>
    %112 = arith.addf %108, %111 : vector<8x1xf32>
    %113 = math.rsqrt %112 : vector<8x1xf32>
    %114 = vector.broadcast %113 : vector<8x1xf32> to vector<8x32xf32>
    %115 = arith.mulf %110, %114 : vector<8x32xf32>
    %c0_65 = arith.constant 0 : index
    %c0_66 = arith.constant 0 : index
    %116 = vector.load %arg6[%c0_65, %c0_66] : memref<1x32xf32, #tpu.memory_space<vmem>>, vector<1x32xf32>
    %117 = vector.broadcast %116 : vector<1x32xf32> to vector<8x32xf32>
    %118 = arith.mulf %115, %117 : vector<8x32xf32>
    %c0_67 = arith.constant 0 : index
    %c0_68 = arith.constant 0 : index
    %119 = vector.load %arg7[%c0_67, %c0_68] : memref<1x32xf32, #tpu.memory_space<vmem>>, vector<1x32xf32>
    %120 = vector.broadcast %119 : vector<1x32xf32> to vector<8x32xf32>
    %121 = arith.addf %118, %120 : vector<8x32xf32>
    %c0_69 = arith.constant 0 : index
    %c0_70 = arith.constant 0 : index
    %c0_71 = arith.constant 0 : index
    %122 = vector.load %arg8[%c0_69, %c0_70, %c0_71] : memref<1x8x32xf32, #tpu.memory_space<vmem>>, vector<1x8x32xf32>
    %123 = vector.shape_cast %122 : vector<1x8x32xf32> to vector<8x32xf32>
    %124 = vector.shape_cast %121 : vector<8x32xf32> to vector<1x8x32xf32>
    tpu.vector_store %arg8[%c0_69, %c0_70, %c0_71], %124 {strides = array<i32>} : memref<1x8x32xf32, #tpu.memory_space<vmem>>, vector<1x8x32xf32>,
    return
  }
  func.func @transform_0(%arg0: i32) -> (i32, i32, i32) {
    %c0_i32 = arith.constant 0 : i32
    %c0_i32_0 = arith.constant 0 : i32
    %c0_i32_1 = arith.constant 0 : i32
    return %arg0, %c0_i32, %c0_i32_0 : i32, i32, i32
  }
  func.func @transform_1(%arg0: i32) -> (i32, i32) {
    %c0_i32 = arith.constant 0 : i32
    %c0_i32_0 = arith.constant 0 : i32
    %c0_i32_1 = arith.constant 0 : i32
    return %c0_i32, %c0_i32_0 : i32, i32
  }
  func.func @transform_2(%arg0: i32) -> (i32, i32) {
    %c0_i32 = arith.constant 0 : i32
    %c0_i32_0 = arith.constant 0 : i32
    %c0_i32_1 = arith.constant 0 : i32
    return %c0_i32, %c0_i32_0 : i32, i32
  }
  func.func @transform_3(%arg0: i32) -> (i32, i32) {
    %c0_i32 = arith.constant 0 : i32
    %c0_i32_0 = arith.constant 0 : i32
    %c0_i32_1 = arith.constant 0 : i32
    return %c0_i32, %c0_i32_0 : i32, i32
  }
  func.func @transform_4(%arg0: i32) -> (i32, i32) {
    %c0_i32 = arith.constant 0 : i32
    %c0_i32_0 = arith.constant 0 : i32
    %c0_i32_1 = arith.constant 0 : i32
    return %c0_i32, %c0_i32_0 : i32, i32
  }
  func.func @transform_5(%arg0: i32) -> (i32, i32) {
    %c0_i32 = arith.constant 0 : i32
    %c0_i32_0 = arith.constant 0 : i32
    %c0_i32_1 = arith.constant 0 : i32
    return %c0_i32, %c0_i32_0 : i32, i32
  }
  func.func @transform_6(%arg0: i32) -> (i32, i32) {
    %c0_i32 = arith.constant 0 : i32
    %c0_i32_0 = arith.constant 0 : i32
    %c0_i32_1 = arith.constant 0 : i32
    return %c0_i32, %c0_i32_0 : i32, i32
  }
  func.func @transform_7(%arg0: i32) -> (i32, i32, i32) {
    %c0_i32 = arith.constant 0 : i32
    %c0_i32_0 = arith.constant 0 : i32
    %c0_i32_1 = arith.constant 0 : i32
    return %arg0, %c0_i32, %c0_i32_0 : i32, i32, i32
  }
}

module attributes {stable_mosaic.version = 11 : i64} {
  func.func @_cross_attn_kernel(%arg0: i32, %arg1: memref<1x8x32xf32, #tpu.memory_space<vmem>>, %arg2: memref<1x12x32xf32, #tpu.memory_space<vmem>>, %arg3: memref<32x32xf32, #tpu.memory_space<vmem>>, %arg4: memref<1x32xf32, #tpu.memory_space<vmem>>, %arg5: memref<32x64xf32, #tpu.memory_space<vmem>>, %arg6: memref<1x64xf32, #tpu.memory_space<vmem>>, %arg7: memref<32x32xf32, #tpu.memory_space<vmem>>, %arg8: memref<1x32xf32, #tpu.memory_space<vmem>>, %arg9: memref<1x32xf32, #tpu.memory_space<vmem>>, %arg10: memref<1x32xf32, #tpu.memory_space<vmem>>, %arg11: memref<1x8x32xf32, #tpu.memory_space<vmem>>, %arg12: memref<8x32xf32, #tpu.memory_space<vmem>>, %arg13: memref<12x64xf32, #tpu.memory_space<vmem>>, %arg14: memref<8x32xf32, #tpu.memory_space<vmem>>) attributes {dimension_semantics = [#tpu.dimension_semantics<parallel>], iteration_bounds = array<i64: 2>, scalar_prefetch = 0 : i64, scratch_operands = 3 : i64, tpu.core_type = #tpu.core_type<tc>, window_params = [{transform_indices = @transform_0, window_bounds = array<i64: 1, 8, 32>}, {transform_indices = @transform_1, window_bounds = array<i64: 1, 12, 32>}, {pipeline_mode = #tpu.pipeline_mode<synchronous>, transform_indices = @transform_2, window_bounds = array<i64: 32, 32>}, {pipeline_mode = #tpu.pipeline_mode<synchronous>, transform_indices = @transform_3, window_bounds = array<i64: 1, 32>}, {pipeline_mode = #tpu.pipeline_mode<synchronous>, transform_indices = @transform_4, window_bounds = array<i64: 32, 64>}, {pipeline_mode = #tpu.pipeline_mode<synchronous>, transform_indices = @transform_5, window_bounds = array<i64: 1, 64>}, {pipeline_mode = #tpu.pipeline_mode<synchronous>, transform_indices = @transform_6, window_bounds = array<i64: 32, 32>}, {pipeline_mode = #tpu.pipeline_mode<synchronous>, transform_indices = @transform_7, window_bounds = array<i64: 1, 32>}, {pipeline_mode = #tpu.pipeline_mode<synchronous>, transform_indices = @transform_8, window_bounds = array<i64: 1, 32>}, {pipeline_mode = #tpu.pipeline_mode<synchronous>, transform_indices = @transform_9, window_bounds = array<i64: 1, 32>}, {transform_indices = @transform_10, window_bounds = array<i64: 1, 8, 32>}]} {
    %c0 = arith.constant 0 : index
    %c0_0 = arith.constant 0 : index
    %c0_1 = arith.constant 0 : index
    %0 = vector.load %arg1[%c0, %c0_0, %c0_1] : memref<1x8x32xf32, #tpu.memory_space<vmem>>, vector<1x8x32xf32>
    %1 = vector.shape_cast %0 : vector<1x8x32xf32> to vector<8x32xf32>
    %c0_2 = arith.constant 0 : index
    %c0_3 = arith.constant 0 : index
    %c0_4 = arith.constant 0 : index
    %2 = vector.load %arg2[%c0_2, %c0_3, %c0_4] : memref<1x12x32xf32, #tpu.memory_space<vmem>>, vector<1x12x32xf32>
    %3 = vector.shape_cast %2 : vector<1x12x32xf32> to vector<12x32xf32>
    %c0_5 = arith.constant 0 : index
    %c0_6 = arith.constant 0 : index
    %4 = vector.load %arg3[%c0_5, %c0_6] : memref<32x32xf32, #tpu.memory_space<vmem>>, vector<32x32xf32>
    %cst = arith.constant dense<0.000000e+00> : vector<8x32xf32>
    %5 = tpu.matmul %1, %4, %cst {dimension_numbers = #tpu.dot_dimension_numbers<[1], [0], [0], [1], [0, 0, 1, 1], [], []>} : vector<8x32xf32>, vector<32x32xf32>, vector<8x32xf32> -> vector<8x32xf32>
    %c0_7 = arith.constant 0 : index
    %c0_8 = arith.constant 0 : index
    %6 = vector.load %arg4[%c0_7, %c0_8] : memref<1x32xf32, #tpu.memory_space<vmem>>, vector<1x32xf32>
    %7 = vector.broadcast %6 : vector<1x32xf32> to vector<8x32xf32>
    %8 = arith.addf %5, %7 : vector<8x32xf32>
    %c0_9 = arith.constant 0 : index
    %c0_10 = arith.constant 0 : index
    %9 = vector.load %arg12[%c0_9, %c0_10] : memref<8x32xf32, #tpu.memory_space<vmem>>, vector<8x32xf32>
    tpu.vector_store %arg12[%c0_9, %c0_10], %8 {strides = array<i32>} : memref<8x32xf32, #tpu.memory_space<vmem>>, vector<8x32xf32>,
    %c0_11 = arith.constant 0 : index
    %c0_12 = arith.constant 0 : index
    %10 = vector.load %arg5[%c0_11, %c0_12] : memref<32x64xf32, #tpu.memory_space<vmem>>, vector<32x64xf32>
    %cst_13 = arith.constant dense<0.000000e+00> : vector<12x64xf32>
    %11 = tpu.matmul %3, %10, %cst_13 {dimension_numbers = #tpu.dot_dimension_numbers<[1], [0], [0], [1], [0, 0, 1, 1], [], []>} : vector<12x32xf32>, vector<32x64xf32>, vector<12x64xf32> -> vector<12x64xf32>
    %c0_14 = arith.constant 0 : index
    %c0_15 = arith.constant 0 : index
    %12 = vector.load %arg6[%c0_14, %c0_15] : memref<1x64xf32, #tpu.memory_space<vmem>>, vector<1x64xf32>
    %13 = vector.broadcast %12 : vector<1x64xf32> to vector<12x64xf32>
    %14 = arith.addf %11, %13 : vector<12x64xf32>
    %c0_16 = arith.constant 0 : index
    %c0_17 = arith.constant 0 : index
    %15 = vector.load %arg13[%c0_16, %c0_17] : memref<12x64xf32, #tpu.memory_space<vmem>>, vector<12x64xf32>
    tpu.vector_store %arg13[%c0_16, %c0_17], %14 {strides = array<i32>} : memref<12x64xf32, #tpu.memory_space<vmem>>, vector<12x64xf32>,
    %c0_18 = arith.constant 0 : index
    %c0_19 = arith.constant 0 : index
    %16 = vector.load %arg12[%c0_18, %c0_19] : memref<8x32xf32, #tpu.memory_space<vmem>>, vector<8x8xf32>
    %c0_20 = arith.constant 0 : index
    %c0_21 = arith.constant 0 : index
    %17 = vector.load %arg13[%c0_20, %c0_21] : memref<12x64xf32, #tpu.memory_space<vmem>>, vector<12x8xf32>
    %c0_22 = arith.constant 0 : index
    %c32 = arith.constant 32 : index
    %18 = vector.load %arg13[%c0_22, %c32] : memref<12x64xf32, #tpu.memory_space<vmem>>, vector<12x8xf32>
    %cst_23 = arith.constant dense<0.000000e+00> : vector<8x12xf32>
    %19 = tpu.matmul %16, %17, %cst_23 {dimension_numbers = #tpu.dot_dimension_numbers<[1], [1], [0], [0], [0, 0, 1, 0], [], []>} : vector<8x8xf32>, vector<12x8xf32>, vector<8x12xf32> -> vector<8x12xf32>
    %cst_24 = arith.constant 0.353553385 : f32
    %20 = vector.broadcast %cst_24 : f32 to vector<8x12xf32>
    %21 = arith.mulf %19, %20 : vector<8x12xf32>
    %cst_25 = arith.constant dense<0xFF800000> : vector<8xf32>
    %22 = vector.multi_reduction <maximumf>, %21, %cst_25 [1] : vector<8x12xf32> to vector<8xf32>
    %23 = vector.shape_cast %22 : vector<8xf32> to vector<8x1xf32>
    %24 = vector.broadcast %23 : vector<8x1xf32> to vector<8x12xf32>
    %25 = arith.subf %21, %24 : vector<8x12xf32>
    %26 = math.exp %25 : vector<8x12xf32>
    %cst_26 = arith.constant dense<0.000000e+00> : vector<8xf32>
    %27 = vector.multi_reduction <add>, %26, %cst_26 [1] : vector<8x12xf32> to vector<8xf32>
    %28 = vector.shape_cast %27 : vector<8xf32> to vector<8x1xf32>
    %cst_27 = arith.constant dense<0.000000e+00> : vector<8x8xf32>
    %29 = tpu.matmul %26, %18, %cst_27 {dimension_numbers = #tpu.dot_dimension_numbers<[1], [0], [0], [1], [0, 0, 1, 1], [], []>} : vector<8x12xf32>, vector<12x8xf32>, vector<8x8xf32> -> vector<8x8xf32>
    %30 = tpu.reciprocal %28 {approx = true} : vector<8x1xf32> -> vector<8x1xf32>
    %31 = vector.broadcast %30 : vector<8x1xf32> to vector<8x8xf32>
    %32 = arith.mulf %29, %31 : vector<8x8xf32>
    %c0_28 = arith.constant 0 : index
    %c0_29 = arith.constant 0 : index
    %33 = vector.load %arg14[%c0_28, %c0_29] : memref<8x32xf32, #tpu.memory_space<vmem>>, vector<8x8xf32>
    tpu.vector_store %arg14[%c0_28, %c0_29], %32 {strides = array<i32>} : memref<8x32xf32, #tpu.memory_space<vmem>>, vector<8x8xf32>,
    %c0_30 = arith.constant 0 : index
    %c8 = arith.constant 8 : index
    %34 = vector.load %arg12[%c0_30, %c8] : memref<8x32xf32, #tpu.memory_space<vmem>>, vector<8x8xf32>
    %c0_31 = arith.constant 0 : index
    %c8_32 = arith.constant 8 : index
    %35 = vector.load %arg13[%c0_31, %c8_32] : memref<12x64xf32, #tpu.memory_space<vmem>>, vector<12x8xf32>
    %c0_33 = arith.constant 0 : index
    %c40 = arith.constant 40 : index
    %36 = vector.load %arg13[%c0_33, %c40] : memref<12x64xf32, #tpu.memory_space<vmem>>, vector<12x8xf32>
    %cst_34 = arith.constant dense<0.000000e+00> : vector<8x12xf32>
    %37 = tpu.matmul %34, %35, %cst_34 {dimension_numbers = #tpu.dot_dimension_numbers<[1], [1], [0], [0], [0, 0, 1, 0], [], []>} : vector<8x8xf32>, vector<12x8xf32>, vector<8x12xf32> -> vector<8x12xf32>
    %cst_35 = arith.constant 0.353553385 : f32
    %38 = vector.broadcast %cst_35 : f32 to vector<8x12xf32>
    %39 = arith.mulf %37, %38 : vector<8x12xf32>
    %cst_36 = arith.constant dense<0xFF800000> : vector<8xf32>
    %40 = vector.multi_reduction <maximumf>, %39, %cst_36 [1] : vector<8x12xf32> to vector<8xf32>
    %41 = vector.shape_cast %40 : vector<8xf32> to vector<8x1xf32>
    %42 = vector.broadcast %41 : vector<8x1xf32> to vector<8x12xf32>
    %43 = arith.subf %39, %42 : vector<8x12xf32>
    %44 = math.exp %43 : vector<8x12xf32>
    %cst_37 = arith.constant dense<0.000000e+00> : vector<8xf32>
    %45 = vector.multi_reduction <add>, %44, %cst_37 [1] : vector<8x12xf32> to vector<8xf32>
    %46 = vector.shape_cast %45 : vector<8xf32> to vector<8x1xf32>
    %cst_38 = arith.constant dense<0.000000e+00> : vector<8x8xf32>
    %47 = tpu.matmul %44, %36, %cst_38 {dimension_numbers = #tpu.dot_dimension_numbers<[1], [0], [0], [1], [0, 0, 1, 1], [], []>} : vector<8x12xf32>, vector<12x8xf32>, vector<8x8xf32> -> vector<8x8xf32>
    %48 = tpu.reciprocal %46 {approx = true} : vector<8x1xf32> -> vector<8x1xf32>
    %49 = vector.broadcast %48 : vector<8x1xf32> to vector<8x8xf32>
    %50 = arith.mulf %47, %49 : vector<8x8xf32>
    %c0_39 = arith.constant 0 : index
    %c8_40 = arith.constant 8 : index
    %51 = vector.load %arg14[%c0_39, %c8_40] : memref<8x32xf32, #tpu.memory_space<vmem>>, vector<8x8xf32>
    tpu.vector_store %arg14[%c0_39, %c8_40], %50 {strides = array<i32>} : memref<8x32xf32, #tpu.memory_space<vmem>>, vector<8x8xf32>,
    %c0_41 = arith.constant 0 : index
    %c16 = arith.constant 16 : index
    %52 = vector.load %arg12[%c0_41, %c16] : memref<8x32xf32, #tpu.memory_space<vmem>>, vector<8x8xf32>
    %c0_42 = arith.constant 0 : index
    %c16_43 = arith.constant 16 : index
    %53 = vector.load %arg13[%c0_42, %c16_43] : memref<12x64xf32, #tpu.memory_space<vmem>>, vector<12x8xf32>
    %c0_44 = arith.constant 0 : index
    %c48 = arith.constant 48 : index
    %54 = vector.load %arg13[%c0_44, %c48] : memref<12x64xf32, #tpu.memory_space<vmem>>, vector<12x8xf32>
    %cst_45 = arith.constant dense<0.000000e+00> : vector<8x12xf32>
    %55 = tpu.matmul %52, %53, %cst_45 {dimension_numbers = #tpu.dot_dimension_numbers<[1], [1], [0], [0], [0, 0, 1, 0], [], []>} : vector<8x8xf32>, vector<12x8xf32>, vector<8x12xf32> -> vector<8x12xf32>
    %cst_46 = arith.constant 0.353553385 : f32
    %56 = vector.broadcast %cst_46 : f32 to vector<8x12xf32>
    %57 = arith.mulf %55, %56 : vector<8x12xf32>
    %cst_47 = arith.constant dense<0xFF800000> : vector<8xf32>
    %58 = vector.multi_reduction <maximumf>, %57, %cst_47 [1] : vector<8x12xf32> to vector<8xf32>
    %59 = vector.shape_cast %58 : vector<8xf32> to vector<8x1xf32>
    %60 = vector.broadcast %59 : vector<8x1xf32> to vector<8x12xf32>
    %61 = arith.subf %57, %60 : vector<8x12xf32>
    %62 = math.exp %61 : vector<8x12xf32>
    %cst_48 = arith.constant dense<0.000000e+00> : vector<8xf32>
    %63 = vector.multi_reduction <add>, %62, %cst_48 [1] : vector<8x12xf32> to vector<8xf32>
    %64 = vector.shape_cast %63 : vector<8xf32> to vector<8x1xf32>
    %cst_49 = arith.constant dense<0.000000e+00> : vector<8x8xf32>
    %65 = tpu.matmul %62, %54, %cst_49 {dimension_numbers = #tpu.dot_dimension_numbers<[1], [0], [0], [1], [0, 0, 1, 1], [], []>} : vector<8x12xf32>, vector<12x8xf32>, vector<8x8xf32> -> vector<8x8xf32>
    %66 = tpu.reciprocal %64 {approx = true} : vector<8x1xf32> -> vector<8x1xf32>
    %67 = vector.broadcast %66 : vector<8x1xf32> to vector<8x8xf32>
    %68 = arith.mulf %65, %67 : vector<8x8xf32>
    %c0_50 = arith.constant 0 : index
    %c16_51 = arith.constant 16 : index
    %69 = vector.load %arg14[%c0_50, %c16_51] : memref<8x32xf32, #tpu.memory_space<vmem>>, vector<8x8xf32>
    tpu.vector_store %arg14[%c0_50, %c16_51], %68 {strides = array<i32>} : memref<8x32xf32, #tpu.memory_space<vmem>>, vector<8x8xf32>,
    %c0_52 = arith.constant 0 : index
    %c24 = arith.constant 24 : index
    %70 = vector.load %arg12[%c0_52, %c24] : memref<8x32xf32, #tpu.memory_space<vmem>>, vector<8x8xf32>
    %c0_53 = arith.constant 0 : index
    %c24_54 = arith.constant 24 : index
    %71 = vector.load %arg13[%c0_53, %c24_54] : memref<12x64xf32, #tpu.memory_space<vmem>>, vector<12x8xf32>
    %c0_55 = arith.constant 0 : index
    %c56 = arith.constant 56 : index
    %72 = vector.load %arg13[%c0_55, %c56] : memref<12x64xf32, #tpu.memory_space<vmem>>, vector<12x8xf32>
    %cst_56 = arith.constant dense<0.000000e+00> : vector<8x12xf32>
    %73 = tpu.matmul %70, %71, %cst_56 {dimension_numbers = #tpu.dot_dimension_numbers<[1], [1], [0], [0], [0, 0, 1, 0], [], []>} : vector<8x8xf32>, vector<12x8xf32>, vector<8x12xf32> -> vector<8x12xf32>
    %cst_57 = arith.constant 0.353553385 : f32
    %74 = vector.broadcast %cst_57 : f32 to vector<8x12xf32>
    %75 = arith.mulf %73, %74 : vector<8x12xf32>
    %cst_58 = arith.constant dense<0xFF800000> : vector<8xf32>
    %76 = vector.multi_reduction <maximumf>, %75, %cst_58 [1] : vector<8x12xf32> to vector<8xf32>
    %77 = vector.shape_cast %76 : vector<8xf32> to vector<8x1xf32>
    %78 = vector.broadcast %77 : vector<8x1xf32> to vector<8x12xf32>
    %79 = arith.subf %75, %78 : vector<8x12xf32>
    %80 = math.exp %79 : vector<8x12xf32>
    %cst_59 = arith.constant dense<0.000000e+00> : vector<8xf32>
    %81 = vector.multi_reduction <add>, %80, %cst_59 [1] : vector<8x12xf32> to vector<8xf32>
    %82 = vector.shape_cast %81 : vector<8xf32> to vector<8x1xf32>
    %cst_60 = arith.constant dense<0.000000e+00> : vector<8x8xf32>
    %83 = tpu.matmul %80, %72, %cst_60 {dimension_numbers = #tpu.dot_dimension_numbers<[1], [0], [0], [1], [0, 0, 1, 1], [], []>} : vector<8x12xf32>, vector<12x8xf32>, vector<8x8xf32> -> vector<8x8xf32>
    %84 = tpu.reciprocal %82 {approx = true} : vector<8x1xf32> -> vector<8x1xf32>
    %85 = vector.broadcast %84 : vector<8x1xf32> to vector<8x8xf32>
    %86 = arith.mulf %83, %85 : vector<8x8xf32>
    %c0_61 = arith.constant 0 : index
    %c24_62 = arith.constant 24 : index
    %87 = vector.load %arg14[%c0_61, %c24_62] : memref<8x32xf32, #tpu.memory_space<vmem>>, vector<8x8xf32>
    tpu.vector_store %arg14[%c0_61, %c24_62], %86 {strides = array<i32>} : memref<8x32xf32, #tpu.memory_space<vmem>>, vector<8x8xf32>,
    %c0_63 = arith.constant 0 : index
    %c0_64 = arith.constant 0 : index
    %88 = vector.load %arg14[%c0_63, %c0_64] : memref<8x32xf32, #tpu.memory_space<vmem>>, vector<8x32xf32>
    %c0_65 = arith.constant 0 : index
    %c0_66 = arith.constant 0 : index
    %89 = vector.load %arg7[%c0_65, %c0_66] : memref<32x32xf32, #tpu.memory_space<vmem>>, vector<32x32xf32>
    %cst_67 = arith.constant dense<0.000000e+00> : vector<8x32xf32>
    %90 = tpu.matmul %88, %89, %cst_67 {dimension_numbers = #tpu.dot_dimension_numbers<[1], [0], [0], [1], [0, 0, 1, 1], [], []>} : vector<8x32xf32>, vector<32x32xf32>, vector<8x32xf32> -> vector<8x32xf32>
    %c0_68 = arith.constant 0 : index
    %c0_69 = arith.constant 0 : index
    %91 = vector.load %arg8[%c0_68, %c0_69] : memref<1x32xf32, #tpu.memory_space<vmem>>, vector<1x32xf32>
    %92 = vector.broadcast %91 : vector<1x32xf32> to vector<8x32xf32>
    %93 = arith.addf %90, %92 : vector<8x32xf32>
    %94 = arith.addf %1, %93 : vector<8x32xf32>
    %cst_70 = arith.constant dense<0.000000e+00> : vector<8xf32>
    %95 = vector.multi_reduction <add>, %94, %cst_70 [1] : vector<8x32xf32> to vector<8xf32>
    %96 = vector.shape_cast %95 : vector<8xf32> to vector<8x1xf32>
    %cst_71 = arith.constant 3.200000e+01 : f32
    %97 = vector.broadcast %cst_71 : f32 to vector<8x1xf32>
    %98 = arith.divf %96, %97 : vector<8x1xf32>
    %99 = vector.broadcast %98 : vector<8x1xf32> to vector<8x32xf32>
    %100 = arith.subf %94, %99 : vector<8x32xf32>
    %101 = arith.mulf %100, %100 : vector<8x32xf32>
    %cst_72 = arith.constant dense<0.000000e+00> : vector<8xf32>
    %102 = vector.multi_reduction <add>, %101, %cst_72 [1] : vector<8x32xf32> to vector<8xf32>
    %103 = vector.shape_cast %102 : vector<8xf32> to vector<8x1xf32>
    %cst_73 = arith.constant 3.200000e+01 : f32
    %104 = vector.broadcast %cst_73 : f32 to vector<8x1xf32>
    %105 = arith.divf %103, %104 : vector<8x1xf32>
    %106 = vector.broadcast %98 : vector<8x1xf32> to vector<8x32xf32>
    %107 = arith.subf %94, %106 : vector<8x32xf32>
    %cst_74 = arith.constant 9.99999974E-6 : f32
    %108 = vector.broadcast %cst_74 : f32 to vector<8x1xf32>
    %109 = arith.addf %105, %108 : vector<8x1xf32>
    %110 = math.rsqrt %109 : vector<8x1xf32>
    %111 = vector.broadcast %110 : vector<8x1xf32> to vector<8x32xf32>
    %112 = arith.mulf %107, %111 : vector<8x32xf32>
    %c0_75 = arith.constant 0 : index
    %c0_76 = arith.constant 0 : index
    %113 = vector.load %arg9[%c0_75, %c0_76] : memref<1x32xf32, #tpu.memory_space<vmem>>, vector<1x32xf32>
    %114 = vector.broadcast %113 : vector<1x32xf32> to vector<8x32xf32>
    %115 = arith.mulf %112, %114 : vector<8x32xf32>
    %c0_77 = arith.constant 0 : index
    %c0_78 = arith.constant 0 : index
    %116 = vector.load %arg10[%c0_77, %c0_78] : memref<1x32xf32, #tpu.memory_space<vmem>>, vector<1x32xf32>
    %117 = vector.broadcast %116 : vector<1x32xf32> to vector<8x32xf32>
    %118 = arith.addf %115, %117 : vector<8x32xf32>
    %c0_79 = arith.constant 0 : index
    %c0_80 = arith.constant 0 : index
    %c0_81 = arith.constant 0 : index
    %119 = vector.load %arg11[%c0_79, %c0_80, %c0_81] : memref<1x8x32xf32, #tpu.memory_space<vmem>>, vector<1x8x32xf32>
    %120 = vector.shape_cast %119 : vector<1x8x32xf32> to vector<8x32xf32>
    %121 = vector.shape_cast %118 : vector<8x32xf32> to vector<1x8x32xf32>
    tpu.vector_store %arg11[%c0_79, %c0_80, %c0_81], %121 {strides = array<i32>} : memref<1x8x32xf32, #tpu.memory_space<vmem>>, vector<1x8x32xf32>,
    return
  }
  func.func @transform_0(%arg0: i32) -> (i32, i32, i32) {
    %c0_i32 = arith.constant 0 : i32
    %c0_i32_0 = arith.constant 0 : i32
    %c0_i32_1 = arith.constant 0 : i32
    return %arg0, %c0_i32, %c0_i32_0 : i32, i32, i32
  }
  func.func @transform_1(%arg0: i32) -> (i32, i32, i32) {
    %c0_i32 = arith.constant 0 : i32
    %c0_i32_0 = arith.constant 0 : i32
    %c0_i32_1 = arith.constant 0 : i32
    return %arg0, %c0_i32, %c0_i32_0 : i32, i32, i32
  }
  func.func @transform_2(%arg0: i32) -> (i32, i32) {
    %c0_i32 = arith.constant 0 : i32
    %c0_i32_0 = arith.constant 0 : i32
    %c0_i32_1 = arith.constant 0 : i32
    return %c0_i32, %c0_i32_0 : i32, i32
  }
  func.func @transform_3(%arg0: i32) -> (i32, i32) {
    %c0_i32 = arith.constant 0 : i32
    %c0_i32_0 = arith.constant 0 : i32
    %c0_i32_1 = arith.constant 0 : i32
    return %c0_i32, %c0_i32_0 : i32, i32
  }
  func.func @transform_4(%arg0: i32) -> (i32, i32) {
    %c0_i32 = arith.constant 0 : i32
    %c0_i32_0 = arith.constant 0 : i32
    %c0_i32_1 = arith.constant 0 : i32
    return %c0_i32, %c0_i32_0 : i32, i32
  }
  func.func @transform_5(%arg0: i32) -> (i32, i32) {
    %c0_i32 = arith.constant 0 : i32
    %c0_i32_0 = arith.constant 0 : i32
    %c0_i32_1 = arith.constant 0 : i32
    return %c0_i32, %c0_i32_0 : i32, i32
  }
  func.func @transform_6(%arg0: i32) -> (i32, i32) {
    %c0_i32 = arith.constant 0 : i32
    %c0_i32_0 = arith.constant 0 : i32
    %c0_i32_1 = arith.constant 0 : i32
    return %c0_i32, %c0_i32_0 : i32, i32
  }
  func.func @transform_7(%arg0: i32) -> (i32, i32) {
    %c0_i32 = arith.constant 0 : i32
    %c0_i32_0 = arith.constant 0 : i32
    %c0_i32_1 = arith.constant 0 : i32
    return %c0_i32, %c0_i32_0 : i32, i32
  }
  func.func @transform_8(%arg0: i32) -> (i32, i32) {
    %c0_i32 = arith.constant 0 : i32
    %c0_i32_0 = arith.constant 0 : i32
    %c0_i32_1 = arith.constant 0 : i32
    return %c0_i32, %c0_i32_0 : i32, i32
  }
  func.func @transform_9(%arg0: i32) -> (i32, i32) {
    %c0_i32 = arith.constant 0 : i32
    %c0_i32_0 = arith.constant 0 : i32
    %c0_i32_1 = arith.constant 0 : i32
    return %c0_i32, %c0_i32_0 : i32, i32
  }
  func.func @transform_10(%arg0: i32) -> (i32, i32, i32) {
    %c0_i32 = arith.constant 0 : i32
    %c0_i32_0 = arith.constant 0 : i32
    %c0_i32_1 = arith.constant 0 : i32
    return %arg0, %c0_i32, %c0_i32_0 : i32, i32, i32
  }
}

module attributes {stable_mosaic.version = 11 : i64} {
  func.func @_ffn_ln_kernel(%arg0: i32, %arg1: memref<16x32xf32, #tpu.memory_space<vmem>>, %arg2: memref<32x128xf32, #tpu.memory_space<vmem>>, %arg3: memref<1x128xf32, #tpu.memory_space<vmem>>, %arg4: memref<128x32xf32, #tpu.memory_space<vmem>>, %arg5: memref<1x32xf32, #tpu.memory_space<vmem>>, %arg6: memref<1x32xf32, #tpu.memory_space<vmem>>, %arg7: memref<1x32xf32, #tpu.memory_space<vmem>>, %arg8: memref<16x32xf32, #tpu.memory_space<vmem>>) attributes {dimension_semantics = [#tpu.dimension_semantics<parallel>], iteration_bounds = array<i64: 1>, scalar_prefetch = 0 : i64, scratch_operands = 0 : i64, tpu.core_type = #tpu.core_type<tc>, window_params = [{transform_indices = @transform_0, window_bounds = array<i64: 16, 32>}, {pipeline_mode = #tpu.pipeline_mode<synchronous>, transform_indices = @transform_1, window_bounds = array<i64: 32, 128>}, {pipeline_mode = #tpu.pipeline_mode<synchronous>, transform_indices = @transform_2, window_bounds = array<i64: 1, 128>}, {pipeline_mode = #tpu.pipeline_mode<synchronous>, transform_indices = @transform_3, window_bounds = array<i64: 128, 32>}, {pipeline_mode = #tpu.pipeline_mode<synchronous>, transform_indices = @transform_4, window_bounds = array<i64: 1, 32>}, {pipeline_mode = #tpu.pipeline_mode<synchronous>, transform_indices = @transform_5, window_bounds = array<i64: 1, 32>}, {pipeline_mode = #tpu.pipeline_mode<synchronous>, transform_indices = @transform_6, window_bounds = array<i64: 1, 32>}, {transform_indices = @transform_7, window_bounds = array<i64: 16, 32>}]} {
    %c0 = arith.constant 0 : index
    %c0_0 = arith.constant 0 : index
    %0 = vector.load %arg1[%c0, %c0_0] : memref<16x32xf32, #tpu.memory_space<vmem>>, vector<16x32xf32>
    %c0_1 = arith.constant 0 : index
    %c0_2 = arith.constant 0 : index
    %1 = vector.load %arg2[%c0_1, %c0_2] : memref<32x128xf32, #tpu.memory_space<vmem>>, vector<32x128xf32>
    %cst = arith.constant dense<0.000000e+00> : vector<16x128xf32>
    %2 = tpu.matmul %0, %1, %cst {dimension_numbers = #tpu.dot_dimension_numbers<[1], [0], [0], [1], [0, 0, 1, 1], [], []>} : vector<16x32xf32>, vector<32x128xf32>, vector<16x128xf32> -> vector<16x128xf32>
    %c0_3 = arith.constant 0 : index
    %c0_4 = arith.constant 0 : index
    %3 = vector.load %arg3[%c0_3, %c0_4] : memref<1x128xf32, #tpu.memory_space<vmem>>, vector<1x128xf32>
    %4 = vector.broadcast %3 : vector<1x128xf32> to vector<16x128xf32>
    %5 = arith.addf %2, %4 : vector<16x128xf32>
    %cst_5 = arith.constant 0.000000e+00 : f32
    %6 = vector.broadcast %cst_5 : f32 to vector<16x128xf32>
    %7 = arith.maximumf %5, %6 : vector<16x128xf32>
    %c0_6 = arith.constant 0 : index
    %c0_7 = arith.constant 0 : index
    %8 = vector.load %arg4[%c0_6, %c0_7] : memref<128x32xf32, #tpu.memory_space<vmem>>, vector<128x32xf32>
    %cst_8 = arith.constant dense<0.000000e+00> : vector<16x32xf32>
    %9 = tpu.matmul %7, %8, %cst_8 {dimension_numbers = #tpu.dot_dimension_numbers<[1], [0], [0], [1], [0, 0, 1, 1], [], []>} : vector<16x128xf32>, vector<128x32xf32>, vector<16x32xf32> -> vector<16x32xf32>
    %c0_9 = arith.constant 0 : index
    %c0_10 = arith.constant 0 : index
    %10 = vector.load %arg5[%c0_9, %c0_10] : memref<1x32xf32, #tpu.memory_space<vmem>>, vector<1x32xf32>
    %11 = vector.broadcast %10 : vector<1x32xf32> to vector<16x32xf32>
    %12 = arith.addf %9, %11 : vector<16x32xf32>
    %13 = arith.addf %0, %12 : vector<16x32xf32>
    %cst_11 = arith.constant dense<0.000000e+00> : vector<16xf32>
    %14 = vector.multi_reduction <add>, %13, %cst_11 [1] : vector<16x32xf32> to vector<16xf32>
    %15 = vector.shape_cast %14 : vector<16xf32> to vector<16x1xf32>
    %cst_12 = arith.constant 3.200000e+01 : f32
    %16 = vector.broadcast %cst_12 : f32 to vector<16x1xf32>
    %17 = arith.divf %15, %16 : vector<16x1xf32>
    %18 = vector.broadcast %17 : vector<16x1xf32> to vector<16x32xf32>
    %19 = arith.subf %13, %18 : vector<16x32xf32>
    %20 = arith.mulf %19, %19 : vector<16x32xf32>
    %cst_13 = arith.constant dense<0.000000e+00> : vector<16xf32>
    %21 = vector.multi_reduction <add>, %20, %cst_13 [1] : vector<16x32xf32> to vector<16xf32>
    %22 = vector.shape_cast %21 : vector<16xf32> to vector<16x1xf32>
    %cst_14 = arith.constant 3.200000e+01 : f32
    %23 = vector.broadcast %cst_14 : f32 to vector<16x1xf32>
    %24 = arith.divf %22, %23 : vector<16x1xf32>
    %25 = vector.broadcast %17 : vector<16x1xf32> to vector<16x32xf32>
    %26 = arith.subf %13, %25 : vector<16x32xf32>
    %cst_15 = arith.constant 9.99999974E-6 : f32
    %27 = vector.broadcast %cst_15 : f32 to vector<16x1xf32>
    %28 = arith.addf %24, %27 : vector<16x1xf32>
    %29 = math.rsqrt %28 : vector<16x1xf32>
    %30 = vector.broadcast %29 : vector<16x1xf32> to vector<16x32xf32>
    %31 = arith.mulf %26, %30 : vector<16x32xf32>
    %c0_16 = arith.constant 0 : index
    %c0_17 = arith.constant 0 : index
    %32 = vector.load %arg6[%c0_16, %c0_17] : memref<1x32xf32, #tpu.memory_space<vmem>>, vector<1x32xf32>
    %33 = vector.broadcast %32 : vector<1x32xf32> to vector<16x32xf32>
    %34 = arith.mulf %31, %33 : vector<16x32xf32>
    %c0_18 = arith.constant 0 : index
    %c0_19 = arith.constant 0 : index
    %35 = vector.load %arg7[%c0_18, %c0_19] : memref<1x32xf32, #tpu.memory_space<vmem>>, vector<1x32xf32>
    %36 = vector.broadcast %35 : vector<1x32xf32> to vector<16x32xf32>
    %37 = arith.addf %34, %36 : vector<16x32xf32>
    %c0_20 = arith.constant 0 : index
    %c0_21 = arith.constant 0 : index
    %38 = vector.load %arg8[%c0_20, %c0_21] : memref<16x32xf32, #tpu.memory_space<vmem>>, vector<16x32xf32>
    tpu.vector_store %arg8[%c0_20, %c0_21], %37 {strides = array<i32>} : memref<16x32xf32, #tpu.memory_space<vmem>>, vector<16x32xf32>,
    return
  }
  func.func @transform_0(%arg0: i32) -> (i32, i32) {
    %c0_i32 = arith.constant 0 : i32
    %c0_i32_0 = arith.constant 0 : i32
    return %arg0, %c0_i32 : i32, i32
  }
  func.func @transform_1(%arg0: i32) -> (i32, i32) {
    %c0_i32 = arith.constant 0 : i32
    %c0_i32_0 = arith.constant 0 : i32
    %c0_i32_1 = arith.constant 0 : i32
    return %c0_i32, %c0_i32_0 : i32, i32
  }
  func.func @transform_2(%arg0: i32) -> (i32, i32) {
    %c0_i32 = arith.constant 0 : i32
    %c0_i32_0 = arith.constant 0 : i32
    %c0_i32_1 = arith.constant 0 : i32
    return %c0_i32, %c0_i32_0 : i32, i32
  }
  func.func @transform_3(%arg0: i32) -> (i32, i32) {
    %c0_i32 = arith.constant 0 : i32
    %c0_i32_0 = arith.constant 0 : i32
    %c0_i32_1 = arith.constant 0 : i32
    return %c0_i32, %c0_i32_0 : i32, i32
  }
  func.func @transform_4(%arg0: i32) -> (i32, i32) {
    %c0_i32 = arith.constant 0 : i32
    %c0_i32_0 = arith.constant 0 : i32
    %c0_i32_1 = arith.constant 0 : i32
    return %c0_i32, %c0_i32_0 : i32, i32
  }
  func.func @transform_5(%arg0: i32) -> (i32, i32) {
    %c0_i32 = arith.constant 0 : i32
    %c0_i32_0 = arith.constant 0 : i32
    %c0_i32_1 = arith.constant 0 : i32
    return %c0_i32, %c0_i32_0 : i32, i32
  }
  func.func @transform_6(%arg0: i32) -> (i32, i32) {
    %c0_i32 = arith.constant 0 : i32
    %c0_i32_0 = arith.constant 0 : i32
    %c0_i32_1 = arith.constant 0 : i32
    return %c0_i32, %c0_i32_0 : i32, i32
  }
  func.func @transform_7(%arg0: i32) -> (i32, i32) {
    %c0_i32 = arith.constant 0 : i32
    %c0_i32_0 = arith.constant 0 : i32
    return %arg0, %c0_i32 : i32, i32
  }
}

</mosaic_0001>

<llo_original>
// kernel: decoder_layer_forward.5
$region0: #{decoder_layer_forward.5}
  #allocation0 [shape = 'u32[]', space=smem, size = 0x4, offset = 0x4, fixed_abs, tag = 'smem constant byte address 0x4 - core index']
  #allocation1 [shape = 'u32[72,128]{1,0:T(1,128)}', space=vmem, size = 0x9000, scoped, tag = 'internal scratch']
  %s0 = inlined_call_operand.vmem [shape: f32[16,32], index: 0, kind: input, shape index: {}]
  %s1 = inlined_call_operand.vmem [shape: f32[32,128], index: 1, kind: input, shape index: {}]
  %s2 = inlined_call_operand.vmem [shape: f32[1,128], index: 2, kind: input, shape index: {}]
  %s3 = inlined_call_operand.vmem [shape: f32[128,32], index: 3, kind: input, shape index: {}]
  %s4 = inlined_call_operand.vmem [shape: f32[1,32], index: 4, kind: input, shape index: {}]
  %s5 = inlined_call_operand.vmem [shape: f32[1,32], index: 5, kind: input, shape index: {}]
  %s6 = inlined_call_operand.vmem [shape: f32[1,32], index: 6, kind: input, shape index: {}]
  %s7 = inlined_call_operand.hbm [shape: f32[16,32], index: 7, kind: output, shape index: {}]
  %s8 = sld [smem:[#allocation0]]
  $region38: #{decoder_layer_forward.5} parent=0
    _
  %s10 = ssub.s32 1, %s8
  %s11 = scalar_select 0, %s10, %s8
  $region1: #{decoder_layer_forward.5} parent=0
    #allocation2 [shape = 'u8[8192]{0}', space=vmem, size = 0x2000, scoped, tag = 'output window, operand 0, single buffered']
    #allocation3 [shape = 's32[1]{0}', space=sflag, size = 0x4, scoped, tag = 'scoped memory for decoder_layer_forward.5']
    %12 = vsyncpa [#allocation3], 0
    // Predicated region
    $region2: #{decoder_layer_forward.5} parent=1 // pred_check
      _
    $region3: #{decoder_layer_forward.5} parent=1 // pred_check_branch
      %14 = sbr.rel (0) target = $region5
    $region4: #{decoder_layer_forward.5} parent=1 // pred_region
      _
    $region5: #{decoder_layer_forward.5} parent=1 // pred_fallthru
      _
    // Predicated region
    $region6: #{decoder_layer_forward.5} parent=1 // pred_check
      _
    $region7: #{decoder_layer_forward.5} parent=1 // pred_check_branch
      %16 = sbr.rel (0) target = $region9
    $region8: #{decoder_layer_forward.5} parent=1 // pred_region
      _
    $region9: #{decoder_layer_forward.5} parent=1 // pred_fallthru
      _
    // Predicated region
    $region10: #{decoder_layer_forward.5} parent=1 // pred_check
      _
    $region11: #{decoder_layer_forward.5} parent=1 // pred_check_branch
      %18 = sbr.rel (0) target = $region13
    $region12: #{decoder_layer_forward.5} parent=1 // pred_region
      _
    $region13: #{decoder_layer_forward.5} parent=1 // pred_fallthru
      _
    // Predicated region
    $region14: #{decoder_layer_forward.5} parent=1 // pred_check
      _
    $region15: #{decoder_layer_forward.5} parent=1 // pred_check_branch
      %20 = sbr.rel (0) target = $region17
    $region16: #{decoder_layer_forward.5} parent=1 // pred_region
      _
    $region17: #{decoder_layer_forward.5} parent=1 // pred_fallthru
      _
    // Predicated region
    $region18: #{decoder_layer_forward.5} parent=1 // pred_check
      _
    $region19: #{decoder_layer_forward.5} parent=1 // pred_check_branch
      %22 = sbr.rel (0) target = $region21
    $region20: #{decoder_layer_forward.5} parent=1 // pred_region
      _
    $region21: #{decoder_layer_forward.5} parent=1 // pred_fallthru
      _
    // Predicated region
    $region22: #{decoder_layer_forward.5} parent=1 // pred_check
      _
    $region23: #{decoder_layer_forward.5} parent=1 // pred_check_branch
      %24 = sbr.rel (0) target = $region25
    $region24: #{decoder_layer_forward.5} parent=1 // pred_region
      _
    $region25: #{decoder_layer_forward.5} parent=1 // pred_fallthru
      _
    // Predicated region
    $region26: #{decoder_layer_forward.5} parent=1 // pred_check
      _
    $region27: #{decoder_layer_forward.5} parent=1 // pred_check_branch
      %26 = sbr.rel (0) target = $region29
    $region28: #{decoder_layer_forward.5} parent=1 // pred_region
      _
    $region29: #{decoder_layer_forward.5} parent=1 // pred_fallthru
      _
    %v27 = vld [vmem:[%s0] sm:$0xff]
    %v28 = vld [vmem:[%s0 + $0x8] sm:$0xff]
    %v29 = vld [vmem:[%s1] sm:$0xff]
    %v30 = vld [vmem:[%s1 + $0x8] sm:$0xff]
    %v31 = vld [vmem:[%s1 + $0x10] sm:$0xff]
    %v32 = vld [vmem:[%s1 + $0x18] sm:$0xff]
    %v33 = vld [vmem:[%s2] sm:$0x1]
    %v35 = vperm.slane %v33, 0
    %vm37 = vcmask 261120
    %v39 = vsel %vm37, %v27, 0
    %v42 = vsel %vm37, %v28, 0
    %44 = vmatpush.msra.mxu0 0.0
    %45 = vmatpush.msra.mxu0 0.0
    %46 = vmatpush.msra.mxu0 0.0
    %47 = vmatpush.msra.mxu0 0.0
    %48 = vmatpush.msra.mxu0 0.0
    %49 = vmatpush.msra.mxu0 0.0
    %50 = vmatpush.msra.mxu0 0.0
    %51 = vmatpush.msra.mxu0 0.0
    %52 = vmatpush.msra.mxu0 0.0
    %53 = vmatpush.msra.mxu0 0.0
    %54 = vmatpush.msra.mxu0 0.0
    %55 = vmatpush.msra.mxu0 0.0
    %56 = vmatpush.msra.mxu0 %v32
    %57 = vmatpush.msra.mxu0 %v31
    %58 = vmatpush.msra.mxu0 %v30
    %59 = vmatpush.msra.mxu0 %v29
    %60 = vmatmul.f32.gmra.mxu0 %v39
    %v61 = vpop.f32.mrf.mxu0
    %v62 = vadd.f32 %v35, %v61
    %63 = vmatmul.f32.gmra.mxu0 %v42
    %v64 = vpop.f32.mrf.mxu0
    %v65 = vadd.f32 %v35, %v64
    %66 = vdwg.mxu0
    %v67 = vmax.f32 %v62, 0.0
    %v68 = vmax.f32 %v65, 0.0
    %v69 = vld [vmem:[%s3] sm:$0xff]
    %v70 = vld [vmem:[%s3 + $0x8] sm:$0xff]
    %v71 = vld [vmem:[%s3 + $0x10] sm:$0xff]
    %v72 = vld [vmem:[%s3 + $0x18] sm:$0xff]
    %v73 = vld [vmem:[%s3 + $0x20] sm:$0xff]
    %v74 = vld [vmem:[%s3 + $0x28] sm:$0xff]
    %v75 = vld [vmem:[%s3 + $0x30] sm:$0xff]
    %v76 = vld [vmem:[%s3 + $0x38] sm:$0xff]
    %v77 = vld [vmem:[%s3 + $0x40] sm:$0xff]
    %v78 = vld [vmem:[%s3 + $0x48] sm:$0xff]
    %v79 = vld [vmem:[%s3 + $0x50] sm:$0xff]
    %v80 = vld [vmem:[%s3 + $0x58] sm:$0xff]
    %v81 = vld [vmem:[%s3 + $0x60] sm:$0xff]
    %v82 = vld [vmem:[%s3 + $0x68] sm:$0xff]
    %v83 = vld [vmem:[%s3 + $0x70] sm:$0xff]
    %v84 = vld [vmem:[%s3 + $0x78] sm:$0xff]
    %v85 = vld [vmem:[%s4] sm:$0x1]
    %v87 = vperm.slane %v85, 0
    %89 = vmatpush.msra.mxu0 %v84
    %90 = vmatpush.msra.mxu0 %v83
    %91 = vmatpush.msra.mxu0 %v82
    %92 = vmatpush.msra.mxu0 %v81
    %93 = vmatpush.msra.mxu0 %v80
    %94 = vmatpush.msra.mxu0 %v79
    %95 = vmatpush.msra.mxu0 %v78
    %96 = vmatpush.msra.mxu0 %v77
    %97 = vmatpush.msra.mxu0 %v76
    %98 = vmatpush.msra.mxu0 %v75
    %99 = vmatpush.msra.mxu0 %v74
    %100 = vmatpush.msra.mxu0 %v73
    %101 = vmatpush.msra.mxu0 %v72
    %102 = vmatpush.msra.mxu0 %v71
    %103 = vmatpush.msra.mxu0 %v70
    %104 = vmatpush.msra.mxu0 %v69
    %105 = vmatmul.f32.gmra.mxu0 %v67
    %v106 = vpop.f32.mrf.mxu0
    %v107 = vadd.f32 %v87, %v106
    %108 = vmatmul.f32.gmra.mxu0 %v68
    %v109 = vpop.f32.mrf.mxu0
    %v110 = vadd.f32 %v87, %v109
    %111 = vdwg.mxu0
    %v112 = vadd.f32 %v27, %v107
    %v113 = vadd.f32 %v28, %v110
    %v114 = vsel %vm37, %v112, 0.0
    %115 = vadd.xlane.f32.xlu0 %v114
    %v116 = vpop.xlane.xlu0 %115
    %v117 = vsel %vm37, %v113, 0.0
    %118 = vadd.xlane.f32.xlu0 %v117
    %v119 = vpop.xlane.xlu0 %118
    %v120 = vrcp.pop 32.0
    %v121 = vmul.f32 32.0, %v120
    %v122 = vsub.f32 1.0, %v121
    %v123 = vmul.f32 %v120, %v122
    %v124 = vadd.f32 %v120, %v123
    %vm125 = vweird.f32 %v120
    %v126 = vsel %vm125, %v120, %v124
    %v127 = vmul.f32 %v116, %v126
    %v128 = vmul.f32 %v119, %v126
    %v129 = vsub.f32 %v112, %v127
    %v130 = vsub.f32 %v113, %v128
    %v131 = vmul.f32 %v129, %v129
    %v132 = vmul.f32 %v130, %v130
    %v133 = vsel %vm37, %v131, 0.0
    %134 = vadd.xlane.f32.xlu0 %v133
    %v135 = vpop.xlane.xlu0 %134
    %v136 = vsel %vm37, %v132, 0.0
    %137 = vadd.xlane.f32.xlu0 %v136
    %v138 = vpop.xlane.xlu0 %137
    %v139 = vmul.f32 %v135, %v126
    %v140 = vmul.f32 %v138, %v126
    %v141 = vadd.f32 %v139, 1e-05
    %v142 = vadd.f32 %v140, 1e-05
    %v143 = vrsqrt.pop %v141
    %v144 = vmul.f32 %v143, %v141
    %v145 = vmul.f32 %v144, %v143
    %v146 = vmul.f32 0.5, %v145
    %v147 = vsub.f32 1.5, %v146
    %v148 = vmul.f32 %v143, %v147
    %vm149 = vweird.f32 %v141
    %vm150 = vweird.f32 %v143
    %vm151 = vmor %vm149, %vm150
    %v152 = vsel %vm151, %v143, %v148
    %v153 = vrsqrt.pop %v142
    %v154 = vmul.f32 %v153, %v142
    %v155 = vmul.f32 %v154, %v153
    %v156 = vmul.f32 0.5, %v155
    %v157 = vsub.f32 1.5, %v156
    %v158 = vmul.f32 %v153, %v157
    %vm159 = vweird.f32 %v142
    %vm160 = vweird.f32 %v153
    %vm161 = vmor %vm159, %vm160
    %v162 = vsel %vm161, %v153, %v158
    %v163 = vmul.f32 %v129, %v152
    %v164 = vmul.f32 %v130, %v162
    %v165 = vld [vmem:[%s5] sm:$0x1]
    %v167 = vperm.slane %v165, 0
    %v169 = vmul.f32 %v163, %v167
    %v170 = vmul.f32 %v164, %v167
    %v171 = vld [vmem:[%s6] sm:$0x1]
    %v173 = vperm.slane %v171, 0
    %v175 = vadd.f32 %v169, %v173
    %v176 = vadd.f32 %v170, %v173
    %177 = vst.msk [vmem:[#allocation2] sm:$0xff] %vm37, %v175
    %178 = vst.msk [vmem:[#allocation2 + $0x8] sm:$0xff] %vm37, %v176
    // Predicated region
    $region30: #{decoder_layer_forward.5} parent=1 // pred_check
      _
    $region31: #{decoder_layer_forward.5} parent=1 // pred_check_branch
      %180 = sbr.rel (0) target = $region33
    $region32: #{decoder_layer_forward.5} parent=1 // pred_region
      %182 = vsyncadd [#allocation3], 0
      %s183 = sshll.u32 [#allocation2], 4
      %s184 = int_to_ptr.vmem [resolvable:$true] %s183
      %s185 = sshll.u32 %s7, 4
      %s186 = int_to_ptr.hbm [resolvable:$true] %s185
      %191 = dma.vmem_to_hbm [thread:$0]  %s184, 256, %s186, [#allocation3], 128, 128, 8
    $region33: #{decoder_layer_forward.5} parent=1 // pred_fallthru
      _
    // Predicated region
    $region34: #{decoder_layer_forward.5} parent=1 // pred_check
      _
    $region35: #{decoder_layer_forward.5} parent=1 // pred_check_branch
      %193 = sbr.rel (0) target = $region37
    $region36: #{decoder_layer_forward.5} parent=1 // pred_region
      %195 = dma.done [#allocation3], 256
    $region37: #{decoder_layer_forward.5} parent=1 // pred_fallthru
      _
    %196 = vsyncpa [#allocation3], 1

// kernel: decoder_layer_forward.3
$region0: #{decoder_layer_forward.3}
  #allocation0 [shape = 'u32[]', space=smem, size = 0x4, offset = 0x4, fixed_abs, tag = 'smem constant byte address 0x4 - core index']
  #allocation1 [shape = 'u32[72,128]{1,0:T(1,128)}', space=vmem, size = 0x9000, scoped, tag = 'internal scratch']
  #allocation2 [shape = 'f32[8,96]{1,0:T(8,128)}', space=vmem, size = 0x1000, scoped, tag = 'scratch operand']
  #allocation3 [shape = 'f32[8,32]{1,0:T(8,128)}', space=vmem, size = 0x1000, scoped, tag = 'scratch operand']
  %s0 = inlined_call_operand.hbm [shape: f32[2,8,32], index: 0, kind: input, shape index: {}]
  %s1 = inlined_call_operand.hbm [shape: f32[32,96], index: 1, kind: input, shape index: {}]
  %s2 = inlined_call_operand.vmem [shape: f32[1,96], index: 2, kind: input, shape index: {}]
  %s3 = inlined_call_operand.hbm [shape: f32[32,32], index: 3, kind: input, shape index: {}]
  %s4 = inlined_call_operand.vmem [shape: f32[1,32], index: 4, kind: input, shape index: {}]
  %s5 = inlined_call_operand.vmem [shape: f32[1,32], index: 5, kind: input, shape index: {}]
  %s6 = inlined_call_operand.vmem [shape: f32[1,32], index: 6, kind: input, shape index: {}]
  %s7 = inlined_call_operand.vmem [shape: f32[2,8,32], index: 7, kind: output, shape index: {}]
  %s8 = sld [smem:[#allocation0]]
  $region73: #{decoder_layer_forward.3} parent=0
    _
  %s10 = ssub.s32 1, %s8
  %s11 = scalar_select 0, %s10, %s8
  $region1: #{decoder_layer_forward.3} parent=0
    #allocation4 [shape = 'u8[8192]{0}', space=vmem, size = 0x2000, scoped, tag = 'input window, operand 0']
    #allocation5 [shape = 's32[2]{0}', space=sflag, size = 0x8, scoped, tag = 'scoped memory for decoder_layer_forward.3']
    #allocation6 [shape = 'u8[16384]{0}', space=vmem, size = 0x4000, scoped, tag = 'input window, operand 1, single buffered']
    #allocation7 [shape = 's32[1]{0}', space=sflag, size = 0x4, scoped, tag = 'scoped memory for decoder_layer_forward.3']
    #allocation8 [shape = 'u8[16384]{0}', space=vmem, size = 0x4000, scoped, tag = 'input window, operand 3, single buffered']
    %12 = vsyncpa [#allocation5], 0
    %s13 = scalar_lea.sflag [#allocation5], 1
    %14 = vsyncpa %s13, 0
    %15 = vsyncpa [#allocation7], 0
    loop: start=0, step=1, limit=4
    $region2: #{decoder_layer_forward.3} parent=1 // loop_pre_header
      _
    $region3: #{decoder_layer_forward.3} parent=1 // loop_header
      %s17 = sphi 0, %s21
      %p18 = scmp.ge.s32.totalorder %s17, 4
      %s27 = sphi 0, %s29
      %s30 = sphi 0, %s27
      %s31 = sphi 0, %s30
      %s47 = sphi 0, %s31
      %s51 = sphi 0, %s51
      %s53 = sphi 0, %s51
      %s54 = sphi 0, %s53
      %s68 = sphi 0, %s54
      %s72 = sphi 0, %s72
      %s74 = sphi 0, %s72
      %s75 = sphi 0, %s74
      %s89 = sphi 0, %s75
      %s93 = sphi 0, %s93
      %s95 = sphi 0, %s93
      %s96 = sphi 0, %s95
      %s110 = sphi 0, %s96
      %s114 = sphi 0, %s114
      %s116 = sphi 0, %s114
      %s117 = sphi 0, %s116
      %s131 = sphi 0, %s117
      %s135 = sphi 0, %s135
      %s137 = sphi 0, %s135
      %s138 = sphi 0, %s137
      %s152 = sphi 0, %s138
      %s156 = sphi 0, %s156
      %s158 = sphi 0, %s156
      %s159 = sphi 0, %s158
      %s173 = sphi 0, %s159
      %s179 = sphi 0, %s181
      %s182 = sphi 0, %s179
      %s183 = sphi 0, %s182
      %s199 = sphi 0, %s183
    $region4: #{decoder_layer_forward.3} parent=1 // loop_header_branch
      %20 = sbr.rel (%p18) target = $region8
    $region5: #{decoder_layer_forward.3} parent=1 // loop_body
      %s22 = ssub.s32 %s17, 1
      %s23 = ssub.s32 %s17, 2
      %s24 = sadd.s32 %s17, 1
      %s25 = ssub.s32 %s17, %s24
      %p26 = scmp.eq.s32.totalorder %s25, 0
      %s28 = sadd.s32 %s27, 1
      %s29 = scalar_select %p26, %s27, %s28
      %p32 = pneg %p26
      %p33 = scmp.eq.s32.totalorder %s17, 1
      %p34 = por %p32, %p33
      %p35 = scmp.ne.s32.totalorder %s27, %s30
      %p36 = scmp.eq.s32.totalorder %s17, 0
      %p37 = por %p35, %p36
      %p38 = scmp.ne.s32.totalorder %s27, %s30
      %p39 = scmp.eq.s32.totalorder %s22, 1
      %p40 = por %p38, %p39
      %p41 = scmp.ne.s32.totalorder %s30, %s31
      %p42 = scmp.eq.s32.totalorder %s22, 0
      %p43 = por %p41, %p42
      %p44 = scmp.ne.s32.totalorder %s30, %s31
      %p45 = scmp.eq.s32.totalorder %s23, 1
      %p46 = por %p44, %p45
      %p48 = scmp.ne.s32.totalorder %s31, %s47
      %p49 = scmp.eq.s32.totalorder %s23, 0
      %p50 = por %p48, %p49
      %s52 = sadd.s32 %s51, 1
      %p55 = scmp.eq.s32.totalorder %s17, 1
      %p56 = scmp.ne.s32.totalorder %s51, %s53
      %p57 = scmp.eq.s32.totalorder %s17, 0
      %p58 = por %p56, %p57
      %p59 = scmp.ne.s32.totalorder %s51, %s53
      %p60 = scmp.eq.s32.totalorder %s22, 1
      %p61 = por %p59, %p60
      %p62 = scmp.ne.s32.totalorder %s53, %s54
      %p63 = scmp.eq.s32.totalorder %s22, 0
      %p64 = por %p62, %p63
      %p65 = scmp.ne.s32.totalorder %s53, %s54
      %p66 = scmp.eq.s32.totalorder %s23, 1
      %p67 = por %p65, %p66
      %p69 = scmp.ne.s32.totalorder %s54, %s68
      %p70 = scmp.eq.s32.totalorder %s23, 0
      %p71 = por %p69, %p70
      %s73 = sadd.s32 %s72, 1
      %p76 = scmp.eq.s32.totalorder %s17, 1
      %p77 = scmp.ne.s32.totalorder %s72, %s74
      %p78 = scmp.eq.s32.totalorder %s17, 0
      %p79 = por %p77, %p78
      %p80 = scmp.ne.s32.totalorder %s72, %s74
      %p81 = scmp.eq.s32.totalorder %s22, 1
      %p82 = por %p80, %p81
      %p83 = scmp.ne.s32.totalorder %s74, %s75
      %p84 = scmp.eq.s32.totalorder %s22, 0
      %p85 = por %p83, %p84
      %p86 = scmp.ne.s32.totalorder %s74, %s75
      %p87 = scmp.eq.s32.totalorder %s23, 1
      %p88 = por %p86, %p87
      %p90 = scmp.ne.s32.totalorder %s75, %s89
      %p91 = scmp.eq.s32.totalorder %s23, 0
      %p92 = por %p90, %p91
      %s94 = sadd.s32 %s93, 1
      %p97 = scmp.eq.s32.totalorder %s17, 1
      %p98 = scmp.ne.s32.totalorder %s93, %s95
      %p99 = scmp.eq.s32.totalorder %s17, 0
      %p100 = por %p98, %p99
      %p101 = scmp.ne.s32.totalorder %s93, %s95
      %p102 = scmp.eq.s32.totalorder %s22, 1
      %p103 = por %p101, %p102
      %p104 = scmp.ne.s32.totalorder %s95, %s96
      %p105 = scmp.eq.s32.totalorder %s22, 0
      %p106 = por %p104, %p105
      %p107 = scmp.ne.s32.totalorder %s95, %s96
      %p108 = scmp.eq.s32.totalorder %s23, 1
      %p109 = por %p107, %p108
      %p111 = scmp.ne.s32.totalorder %s96, %s110
      %p112 = scmp.eq.s32.totalorder %s23, 0
      %p113 = por %p111, %p112
      %s115 = sadd.s32 %s114, 1
      %p118 = scmp.eq.s32.totalorder %s17, 1
      %p119 = scmp.ne.s32.totalorder %s114, %s116
      %p120 = scmp.eq.s32.totalorder %s17, 0
      %p121 = por %p119, %p120
      %p122 = scmp.ne.s32.totalorder %s114, %s116
      %p123 = scmp.eq.s32.totalorder %s22, 1
      %p124 = por %p122, %p123
      %p125 = scmp.ne.s32.totalorder %s116, %s117
      %p126 = scmp.eq.s32.totalorder %s22, 0
      %p127 = por %p125, %p126
      %p128 = scmp.ne.s32.totalorder %s116, %s117
      %p129 = scmp.eq.s32.totalorder %s23, 1
      %p130 = por %p128, %p129
      %p132 = scmp.ne.s32.totalorder %s117, %s131
      %p133 = scmp.eq.s32.totalorder %s23, 0
      %p134 = por %p132, %p133
      %s136 = sadd.s32 %s135, 1
      %p139 = scmp.eq.s32.totalorder %s17, 1
      %p140 = scmp.ne.s32.totalorder %s135, %s137
      %p141 = scmp.eq.s32.totalorder %s17, 0
      %p142 = por %p140, %p141
      %p143 = scmp.ne.s32.totalorder %s135, %s137
      %p144 = scmp.eq.s32.totalorder %s22, 1
      %p145 = por %p143, %p144
      %p146 = scmp.ne.s32.totalorder %s137, %s138
      %p147 = scmp.eq.s32.totalorder %s22, 0
      %p148 = por %p146, %p147
      %p149 = scmp.ne.s32.totalorder %s137, %s138
      %p150 = scmp.eq.s32.totalorder %s23, 1
      %p151 = por %p149, %p150
      %p153 = scmp.ne.s32.totalorder %s138, %s152
      %p154 = scmp.eq.s32.totalorder %s23, 0
      %p155 = por %p153, %p154
      %s157 = sadd.s32 %s156, 1
      %p160 = scmp.eq.s32.totalorder %s17, 1
      %p161 = scmp.ne.s32.totalorder %s156, %s158
      %p162 = scmp.eq.s32.totalorder %s17, 0
      %p163 = por %p161, %p162
      %p164 = scmp.ne.s32.totalorder %s156, %s158
      %p165 = scmp.eq.s32.totalorder %s22, 1
      %p166 = por %p164, %p165
      %p167 = scmp.ne.s32.totalorder %s158, %s159
      %p168 = scmp.eq.s32.totalorder %s22, 0
      %p169 = por %p167, %p168
      %p170 = scmp.ne.s32.totalorder %s158, %s159
      %p171 = scmp.eq.s32.totalorder %s23, 1
      %p172 = por %p170, %p171
      %p174 = scmp.ne.s32.totalorder %s159, %s173
      %p175 = scmp.eq.s32.totalorder %s23, 0
      %p176 = por %p174, %p175
      %s177 = ssub.s32 %s17, %s24
      %p178 = scmp.eq.s32.totalorder %s177, 0
      %s180 = sadd.s32 %s179, 1
      %s181 = scalar_select %p178, %s179, %s180
      %p184 = pneg %p178
      %p185 = scmp.eq.s32.totalorder %s17, 1
      %p186 = por %p184, %p185
      %p187 = scmp.ne.s32.totalorder %s179, %s182
      %p188 = scmp.eq.s32.totalorder %s17, 0
      %p189 = por %p187, %p188
      %p190 = scmp.ne.s32.totalorder %s179, %s182
      %p191 = scmp.eq.s32.totalorder %s22, 1
      %p192 = por %p190, %p191
      %p193 = scmp.ne.s32.totalorder %s182, %s183
      %p194 = scmp.eq.s32.totalorder %s22, 0
      %p195 = por %p193, %p194
      %p196 = scmp.ne.s32.totalorder %s182, %s183
      %p197 = scmp.eq.s32.totalorder %s23, 1
      %p198 = por %p196, %p197
      %p200 = scmp.ne.s32.totalorder %s183, %s199
      %p201 = scmp.eq.s32.totalorder %s23, 0
      %p202 = por %p200, %p201
      %p203 = scmp.le.s32.totalorder 1, %s17
      %p204 = scmp.lt.s32.totalorder %s17, 3
      %p205 = pnand %p203, %p204
      %p206 = pneg %p205
      // Predicated region
      $region9: #{decoder_layer_forward.3} parent=5 // pred_check
        _
      $region10: #{decoder_layer_forward.3} parent=5 // pred_check_branch
        %208 = sbr.rel (%p205) target = $region12
      $region11: #{decoder_layer_forward.3} parent=5 // pred_region
        %s209 = ssub.s32 %s17, 1
        // Predicated region
        $region13: #{decoder_layer_forward.3} parent=11 // pred_check
          %p210 = pneg %p64
        $region14: #{decoder_layer_forward.3} parent=11 // pred_check_branch
          %212 = sbr.rel (%p210) target = $region16
        $region15: #{decoder_layer_forward.3} parent=11 // pred_region
          %214 = vsyncadd [#allocation7], 0
          %s215 = sshll.u32 %s1, 4
          %s216 = int_to_ptr.hbm [resolvable:$true] %s215
          %s217 = sshll.u32 [#allocation6], 4
          %s218 = int_to_ptr.vmem [resolvable:$true] %s217
          %223 = dma.hbm_to_vmem [thread:$0]  %s216, 512, %s218, [#allocation7], 128, 128, 8
        $region16: #{decoder_layer_forward.3} parent=11 // pred_fallthru
          _
        // Predicated region
        $region17: #{decoder_layer_forward.3} parent=11 // pred_check
          %p224 = pneg %p85
        $region18: #{decoder_layer_forward.3} parent=11 // pred_check_branch
          %226 = sbr.rel (%p224) target = $region20
        $region19: #{decoder_layer_forward.3} parent=11 // pred_region
          _
        $region20: #{decoder_layer_forward.3} parent=11 // pred_fallthru
          _
        // Predicated region
        $region21: #{decoder_layer_forward.3} parent=11 // pred_check
          %p227 = pneg %p106
        $region22: #{decoder_layer_forward.3} parent=11 // pred_check_branch
          %229 = sbr.rel (%p227) target = $region24
        $region23: #{decoder_layer_forward.3} parent=11 // pred_region
          %231 = vsyncadd [#allocation7], 0
          %s232 = sshll.u32 %s3, 4
          %s233 = int_to_ptr.hbm [resolvable:$true] %s232
          %s234 = sshll.u32 [#allocation8], 4
          %s235 = int_to_ptr.vmem [resolvable:$true] %s234
          %240 = dma.hbm_to_vmem [thread:$0]  %s233, 512, %s235, [#allocation7], 128, 128, 8
        $region24: #{decoder_layer_forward.3} parent=11 // pred_fallthru
          _
        // Predicated region
        $region25: #{decoder_layer_forward.3} parent=11 // pred_check
          %p241 = pneg %p127
        $region26: #{decoder_layer_forward.3} parent=11 // pred_check_branch
          %243 = sbr.rel (%p241) target = $region28
        $region27: #{decoder_layer_forward.3} parent=11 // pred_region
          _
        $region28: #{decoder_layer_forward.3} parent=11 // pred_fallthru
          _
        // Predicated region
        $region29: #{decoder_layer_forward.3} parent=11 // pred_check
          %p244 = pneg %p148
        $region30: #{decoder_layer_forward.3} parent=11 // pred_check_branch
          %246 = sbr.rel (%p244) target = $region32
        $region31: #{decoder_layer_forward.3} parent=11 // pred_region
          _
        $region32: #{decoder_layer_forward.3} parent=11 // pred_fallthru
          _
        // Predicated region
        $region33: #{decoder_layer_forward.3} parent=11 // pred_check
          %p247 = pneg %p169
        $region34: #{decoder_layer_forward.3} parent=11 // pred_check_branch
          %249 = sbr.rel (%p247) target = $region36
        $region35: #{decoder_layer_forward.3} parent=11 // pred_region
          _
        $region36: #{decoder_layer_forward.3} parent=11 // pred_fallthru
          _
      $region12: #{decoder_layer_forward.3} parent=5 // pred_fallthru
        _
      %p250 = scmp.lt.s32.totalorder %s17, 2
      // Predicated region
      $region37: #{decoder_layer_forward.3} parent=5 // pred_check
        %p251 = pneg %p250
      $region38: #{decoder_layer_forward.3} parent=5 // pred_check_branch
        %253 = sbr.rel (%p251) target = $region40
      $region39: #{decoder_layer_forward.3} parent=5 // pred_region
        // Predicated region
        $region41: #{decoder_layer_forward.3} parent=39 // pred_check
          %p254 = pneg %p37
        $region42: #{decoder_layer_forward.3} parent=39 // pred_check_branch
          %256 = sbr.rel (%p254) target = $region44
        $region43: #{decoder_layer_forward.3} parent=39 // pred_region
          %s257 = sand.u32 %s27, 1
          %s258 = scalar_lea.sflag [#allocation5], %s257
          %s259 = sand.u32 %s27, 1
          %s260 = smul.addr %s259, 8
          %s261 = scalar_lea.vmem [#allocation4], %s260
          %263 = vsyncadd %s258, 0
          %s264 = smul.addr %s17, 8
          %s265 = scalar_lea.hbm %s0, %s264
          %s267 = sshll.u32 %s265, 4
          %s268 = int_to_ptr.hbm [resolvable:$true] %s267
          %s269 = sshll.u32 %s261, 4
          %s270 = int_to_ptr.vmem [resolvable:$true] %s269
          %272 = dma.hbm_to_vmem [thread:$0]  %s268, 128, %s270, %s258
        $region44: #{decoder_layer_forward.3} parent=39 // pred_fallthru
          _
      $region40: #{decoder_layer_forward.3} parent=5 // pred_fallthru
        _
      %p273 = scmp.le.s32.totalorder 1, %s17
      %p274 = scmp.lt.s32.totalorder %s17, 3
      %p275 = pnand %p273, %p274
      %p276 = pneg %p275
      // Predicated region
      $region45: #{decoder_layer_forward.3} parent=5 // pred_check
        _
      $region46: #{decoder_layer_forward.3} parent=5 // pred_check_branch
        %278 = sbr.rel (%p275) target = $region48
      $region47: #{decoder_layer_forward.3} parent=5 // pred_region
        %s279 = ssub.s32 %s17, 1
        %s280 = sand.u32 %s30, 1
        %s281 = scalar_lea.sflag [#allocation5], %s280
        %s282 = sand.u32 %s30, 1
        %s283 = smul.addr %s282, 8
        %s284 = scalar_lea.vmem [#allocation4], %s283
        // Predicated region
        $region49: #{decoder_layer_forward.3} parent=47 // pred_check
          %p285 = pneg %p43
        $region50: #{decoder_layer_forward.3} parent=47 // pred_check_branch
          %287 = sbr.rel (%p285) target = $region52
        $region51: #{decoder_layer_forward.3} parent=47 // pred_region
          %289 = dma.done %s281, 128
        $region52: #{decoder_layer_forward.3} parent=47 // pred_fallthru
          _
        // Predicated region
        $region53: #{decoder_layer_forward.3} parent=47 // pred_check
          %p290 = pneg %p64
        $region54: #{decoder_layer_forward.3} parent=47 // pred_check_branch
          %292 = sbr.rel (%p290) target = $region56
        $region55: #{decoder_layer_forward.3} parent=47 // pred_region
          %294 = dma.done [#allocation7], 512
        $region56: #{decoder_layer_forward.3} parent=47 // pred_fallthru
          _
        // Predicated region
        $region57: #{decoder_layer_forward.3} parent=47 // pred_check
          %p295 = pneg %p106
        $region58: #{decoder_layer_forward.3} parent=47 // pred_check_branch
          %297 = sbr.rel (%p295) target = $region60
        $region59: #{decoder_layer_forward.3} parent=47 // pred_region
          %299 = dma.done [#allocation7], 512
        $region60: #{decoder_layer_forward.3} parent=47 // pred_fallthru
          _
        %s300 = sand.u32 %s30, 1
        %s301 = scalar_lea.sflag [#allocation5], %s300
        %s302 = sand.u32 %s30, 1
        %s303 = smul.addr %s302, 8
        %s304 = scalar_lea.vmem [#allocation4], %s303
        %p305 = pneg %p43
        %p306 = pneg %p40
        %p307 = pneg %p64
        %p308 = pneg %p61
        %p309 = pneg %p85
        %p310 = pneg %p82
        %p311 = pneg %p106
        %p312 = pneg %p103
        %p313 = pneg %p127
        %p314 = pneg %p124
        %p315 = pneg %p148
        %p316 = pneg %p145
        %p317 = pneg %p169
        %p318 = pneg %p166
        %p319 = pneg %p195
        %p320 = pneg %p192
        %p321 = scmp.lt.s32.totalorder %s22, 1
        %s322 = scalar_select %p321, %s22, 1
        %s323 = smul.addr %s322, 8
        %s324 = scalar_lea.vmem %s7, %s323
        %p325 = scmp.lt.s32.totalorder %s22, 1
        %s326 = scalar_select %p325, %s22, 1
        %s327 = smul.addr %s326, 8
        %s328 = scalar_lea.vmem %s7, %s327
        %v329 = vld [vmem:[%s284] sm:$0xff]
        %v330 = vld [vmem:[#allocation6] sm:$0xff]
        %v331 = vld [vmem:[#allocation6 + $0x8] sm:$0xff]
        %v332 = vld [vmem:[#allocation6 + $0x10] sm:$0xff]
        %v333 = vld [vmem:[#allocation6 + $0x18] sm:$0xff]
        %v334 = vld [vmem:[%s2] sm:$0x1]
        %v336 = vperm.slane %v334, 0
        %vm338 = vcmask 261120
        %v340 = vsel %vm338, %v329, 0
        %342 = vmatpush.msra.mxu0 0.0
        %343 = vmatpush.msra.mxu0 0.0
        %344 = vmatpush.msra.mxu0 0.0
        %345 = vmatpush.msra.mxu0 0.0
        %346 = vmatpush.msra.mxu0 0.0
        %347 = vmatpush.msra.mxu0 0.0
        %348 = vmatpush.msra.mxu0 0.0
        %349 = vmatpush.msra.mxu0 0.0
        %350 = vmatpush.msra.mxu0 0.0
        %351 = vmatpush.msra.mxu0 0.0
        %352 = vmatpush.msra.mxu0 0.0
        %353 = vmatpush.msra.mxu0 0.0
        %354 = vmatpush.msra.mxu0 %v333
        %355 = vmatpush.msra.mxu0 %v332
        %356 = vmatpush.msra.mxu0 %v331
        %357 = vmatpush.msra.mxu0 %v330
        %358 = vmatmul.f32.gmra.mxu0 %v340
        %v359 = vpop.f32.mrf.mxu0
        %v360 = vadd.f32 %v336, %v359
        %361 = vdwg.mxu0
        %vm362 = vcmask 785408
        %363 = vst.msk [vmem:[#allocation2] sm:$0xff] %vm362, %v360
        %v364 = vlaneseq
        %v365 = vshrl.u32 %v364, 7
        %v366 = vlaneseq
        %v367 = vand.u32 %v366, 127
        %vm368 = vcmp.le.s32.totalorder %v367, %v365
        %v369 = vld [vmem:[#allocation2] sm:$0xff]
        %371 = vrot.lane.b32.xlu0 %v369, 96
        %v372 = vpop.permute.xlu0 %371
        %vm373 = vcmask 64512
        %v374 = vsel %vm373, %v369, 0
        %v376 = vsel %vm373, %v372, 0
        %378 = vmatpush.xpose.msra.mxu0 0.0
        %379 = vmatpush.xpose.msra.mxu0 0.0
        %380 = vmatpush.xpose.msra.mxu0 0.0
        %381 = vmatpush.xpose.msra.mxu0 0.0
        %382 = vmatpush.xpose.msra.mxu0 0.0
        %383 = vmatpush.xpose.msra.mxu0 0.0
        %384 = vmatpush.xpose.msra.mxu0 0.0
        %385 = vmatpush.xpose.msra.mxu0 0.0
        %386 = vmatpush.xpose.msra.mxu0 0.0
        %387 = vmatpush.xpose.msra.mxu0 0.0
        %388 = vmatpush.xpose.msra.mxu0 0.0
        %389 = vmatpush.xpose.msra.mxu0 0.0
        %390 = vmatpush.xpose.msra.mxu0 0.0
        %391 = vmatpush.xpose.msra.mxu0 0.0
        %392 = vmatpush.xpose.msra.mxu0 0.0
        %393 = vmatpush.xpose.msra.mxu0 %v376
        %394 = vmatmul.f32.gmra.mxu0 %v374
        %v395 = vpop.f32.mrf.mxu0
        %v396 = vadd.f32 0.0, %v395
        %397 = vdwg.mxu0
        %v398 = vmul.f32 %v396, 0.35355338
        %v399 = vsel %vm368, %v398, -inf
        %v400 = vsel %vm373, %v399, -inf
        %401 = vmax.xlane.f32.xlu0 %v400
        %v402 = vpop.xlane.xlu0 %401
        %v403 = vsub.f32 %v399, %v402
        %v404 = vmul.f32 %v403, 1.442695
        %v405 = vpow.pop %v404
        %v406 = vsel %vm373, %v405, 0.0
        %407 = vadd.xlane.f32.xlu0 %v406
        %v408 = vpop.xlane.xlu0 %407
        %409 = vrot.lane.b32.xlu0 %v369, 64
        %v410 = vpop.permute.xlu0 %409
        %v413 = vsel %vm373, %v405, 0
        %415 = vmatpush.msra.mxu0 0.0
        %416 = vmatpush.msra.mxu0 0.0
        %417 = vmatpush.msra.mxu0 0.0
        %418 = vmatpush.msra.mxu0 0.0
        %419 = vmatpush.msra.mxu0 0.0
        %420 = vmatpush.msra.mxu0 0.0
        %421 = vmatpush.msra.mxu0 0.0
        %422 = vmatpush.msra.mxu0 0.0
        %423 = vmatpush.msra.mxu0 0.0
        %424 = vmatpush.msra.mxu0 0.0
        %425 = vmatpush.msra.mxu0 0.0
        %426 = vmatpush.msra.mxu0 0.0
        %427 = vmatpush.msra.mxu0 0.0
        %428 = vmatpush.msra.mxu0 0.0
        %429 = vmatpush.msra.mxu0 0.0
        %430 = vmatpush.msra.mxu0 %v410
        %431 = vmatmul.f32.gmra.mxu0 %v413
        %v432 = vpop.f32.mrf.mxu0
        %v433 = vadd.f32 0.0, %v432
        %434 = vdwg.mxu0
        %v435 = vrcp.pop %v408
        %v436 = vmul.f32 %v433, %v435
        %437 = vst.msk [vmem:[#allocation3] sm:$0xff] %vm373, %v436
        %v438 = vld [vmem:[#allocation2] sm:$0xff]
        %440 = vrot.lane.b32.xlu0 %v438, 120
        %v441 = vpop.permute.xlu0 %440
        %442 = vrot.lane.b32.xlu0 %v438, 88
        %v443 = vpop.permute.xlu0 %442
        %v444 = vsel %vm373, %v441, 0
        %v446 = vsel %vm373, %v443, 0
        %448 = vmatpush.xpose.msra.mxu0 0.0
        %449 = vmatpush.xpose.msra.mxu0 0.0
        %450 = vmatpush.xpose.msra.mxu0 0.0
        %451 = vmatpush.xpose.msra.mxu0 0.0
        %452 = vmatpush.xpose.msra.mxu0 0.0
        %453 = vmatpush.xpose.msra.mxu0 0.0
        %454 = vmatpush.xpose.msra.mxu0 0.0
        %455 = vmatpush.xpose.msra.mxu0 0.0
        %456 = vmatpush.xpose.msra.mxu0 0.0
        %457 = vmatpush.xpose.msra.mxu0 0.0
        %458 = vmatpush.xpose.msra.mxu0 0.0
        %459 = vmatpush.xpose.msra.mxu0 0.0
        %460 = vmatpush.xpose.msra.mxu0 0.0
        %461 = vmatpush.xpose.msra.mxu0 0.0
        %462 = vmatpush.xpose.msra.mxu0 0.0
        %463 = vmatpush.xpose.msra.mxu0 %v446
        %464 = vmatmul.f32.gmra.mxu0 %v444
        %v465 = vpop.f32.mrf.mxu0
        %v466 = vadd.f32 0.0, %v465
        %467 = vdwg.mxu0
        %v468 = vmul.f32 %v466, 0.35355338
        %v469 = vsel %vm368, %v468, -inf
        %v470 = vsel %vm373, %v469, -inf
        %471 = vmax.xlane.f32.xlu0 %v470
        %v472 = vpop.xlane.xlu0 %471
        %v473 = vsub.f32 %v469, %v472
        %v474 = vmul.f32 %v473, 1.442695
        %v475 = vpow.pop %v474
        %v476 = vsel %vm373, %v475, 0.0
        %477 = vadd.xlane.f32.xlu0 %v476
        %v478 = vpop.xlane.xlu0 %477
        %479 = vrot.lane.b32.xlu0 %v438, 56
        %v480 = vpop.permute.xlu0 %479
        %v483 = vsel %vm373, %v475, 0
        %485 = vmatpush.msra.mxu0 0.0
        %486 = vmatpush.msra.mxu0 0.0
        %487 = vmatpush.msra.mxu0 0.0
        %488 = vmatpush.msra.mxu0 0.0
        %489 = vmatpush.msra.mxu0 0.0
        %490 = vmatpush.msra.mxu0 0.0
        %491 = vmatpush.msra.mxu0 0.0
        %492 = vmatpush.msra.mxu0 0.0
        %493 = vmatpush.msra.mxu0 0.0
        %494 = vmatpush.msra.mxu0 0.0
        %495 = vmatpush.msra.mxu0 0.0
        %496 = vmatpush.msra.mxu0 0.0
        %497 = vmatpush.msra.mxu0 0.0
        %498 = vmatpush.msra.mxu0 0.0
        %499 = vmatpush.msra.mxu0 0.0
        %500 = vmatpush.msra.mxu0 %v480
        %501 = vmatmul.f32.gmra.mxu0 %v483
        %v502 = vpop.f32.mrf.mxu0
        %v503 = vadd.f32 0.0, %v502
        %504 = vdwg.mxu0
        %v505 = vrcp.pop %v478
        %v506 = vmul.f32 %v503, %v505
        %508 = vrot.lane.b32.xlu0 %v506, 8
        %v509 = vpop.permute.xlu0 %508
        %vm511 = vcmask 130112
        %512 = vst.msk [vmem:[#allocation3] sm:$0xff] %vm511, %v509
        %v513 = vld [vmem:[#allocation2] sm:$0xff]
        %515 = vrot.lane.b32.xlu0 %v513, 112
        %v516 = vpop.permute.xlu0 %515
        %517 = vrot.lane.b32.xlu0 %v513, 80
        %v518 = vpop.permute.xlu0 %517
        %v519 = vsel %vm373, %v516, 0
        %v521 = vsel %vm373, %v518, 0
        %523 = vmatpush.xpose.msra.mxu0 0.0
        %524 = vmatpush.xpose.msra.mxu0 0.0
        %525 = vmatpush.xpose.msra.mxu0 0.0
        %526 = vmatpush.xpose.msra.mxu0 0.0
        %527 = vmatpush.xpose.msra.mxu0 0.0
        %528 = vmatpush.xpose.msra.mxu0 0.0
        %529 = vmatpush.xpose.msra.mxu0 0.0
        %530 = vmatpush.xpose.msra.mxu0 0.0
        %531 = vmatpush.xpose.msra.mxu0 0.0
        %532 = vmatpush.xpose.msra.mxu0 0.0
        %533 = vmatpush.xpose.msra.mxu0 0.0
        %534 = vmatpush.xpose.msra.mxu0 0.0
        %535 = vmatpush.xpose.msra.mxu0 0.0
        %536 = vmatpush.xpose.msra.mxu0 0.0
        %537 = vmatpush.xpose.msra.mxu0 0.0
        %538 = vmatpush.xpose.msra.mxu0 %v521
        %539 = vmatmul.f32.gmra.mxu0 %v519
        %v540 = vpop.f32.mrf.mxu0
        %v541 = vadd.f32 0.0, %v540
        %542 = vdwg.mxu0
        %v543 = vmul.f32 %v541, 0.35355338
        %v544 = vsel %vm368, %v543, -inf
        %v545 = vsel %vm373, %v544, -inf
        %546 = vmax.xlane.f32.xlu0 %v545
        %v547 = vpop.xlane.xlu0 %546
        %v548 = vsub.f32 %v544, %v547
        %v549 = vmul.f32 %v548, 1.442695
        %v550 = vpow.pop %v549
        %v551 = vsel %vm373, %v550, 0.0
        %552 = vadd.xlane.f32.xlu0 %v551
        %v553 = vpop.xlane.xlu0 %552
        %554 = vrot.lane.b32.xlu0 %v513, 48
        %v555 = vpop.permute.xlu0 %554
        %v558 = vsel %vm373, %v550, 0
        %560 = vmatpush.msra.mxu0 0.0
        %561 = vmatpush.msra.mxu0 0.0
        %562 = vmatpush.msra.mxu0 0.0
        %563 = vmatpush.msra.mxu0 0.0
        %564 = vmatpush.msra.mxu0 0.0
        %565 = vmatpush.msra.mxu0 0.0
        %566 = vmatpush.msra.mxu0 0.0
        %567 = vmatpush.msra.mxu0 0.0
        %568 = vmatpush.msra.mxu0 0.0
        %569 = vmatpush.msra.mxu0 0.0
        %570 = vmatpush.msra.mxu0 0.0
        %571 = vmatpush.msra.mxu0 0.0
        %572 = vmatpush.msra.mxu0 0.0
        %573 = vmatpush.msra.mxu0 0.0
        %574 = vmatpush.msra.mxu0 0.0
        %575 = vmatpush.msra.mxu0 %v555
        %576 = vmatmul.f32.gmra.mxu0 %v558
        %v577 = vpop.f32.mrf.mxu0
        %v578 = vadd.f32 0.0, %v577
        %579 = vdwg.mxu0
        %v580 = vrcp.pop %v553
        %v581 = vmul.f32 %v578, %v580
        %583 = vrot.lane.b32.xlu0 %v581, 16
        %v584 = vpop.permute.xlu0 %583
        %vm586 = vcmask 195712
        %587 = vst.msk [vmem:[#allocation3] sm:$0xff] %vm586, %v584
        %v588 = vld [vmem:[#allocation2] sm:$0xff]
        %590 = vrot.lane.b32.xlu0 %v588, 104
        %v591 = vpop.permute.xlu0 %590
        %592 = vrot.lane.b32.xlu0 %v588, 72
        %v593 = vpop.permute.xlu0 %592
        %v594 = vsel %vm373, %v591, 0
        %v596 = vsel %vm373, %v593, 0
        %598 = vmatpush.xpose.msra.mxu0 0.0
        %599 = vmatpush.xpose.msra.mxu0 0.0
        %600 = vmatpush.xpose.msra.mxu0 0.0
        %601 = vmatpush.xpose.msra.mxu0 0.0
        %602 = vmatpush.xpose.msra.mxu0 0.0
        %603 = vmatpush.xpose.msra.mxu0 0.0
        %604 = vmatpush.xpose.msra.mxu0 0.0
        %605 = vmatpush.xpose.msra.mxu0 0.0
        %606 = vmatpush.xpose.msra.mxu0 0.0
        %607 = vmatpush.xpose.msra.mxu0 0.0
        %608 = vmatpush.xpose.msra.mxu0 0.0
        %609 = vmatpush.xpose.msra.mxu0 0.0
        %610 = vmatpush.xpose.msra.mxu0 0.0
        %611 = vmatpush.xpose.msra.mxu0 0.0
        %612 = vmatpush.xpose.msra.mxu0 0.0
        %613 = vmatpush.xpose.msra.mxu0 %v596
        %614 = vmatmul.f32.gmra.mxu0 %v594
        %v615 = vpop.f32.mrf.mxu0
        %v616 = vadd.f32 0.0, %v615
        %617 = vdwg.mxu0
        %v618 = vmul.f32 %v616, 0.35355338
        %v619 = vsel %vm368, %v618, -inf
        %v620 = vsel %vm373, %v619, -inf
        %621 = vmax.xlane.f32.xlu0 %v620
        %v622 = vpop.xlane.xlu0 %621
        %v623 = vsub.f32 %v619, %v622
        %v624 = vmul.f32 %v623, 1.442695
        %v625 = vpow.pop %v624
        %v626 = vsel %vm373, %v625, 0.0
        %627 = vadd.xlane.f32.xlu0 %v626
        %v628 = vpop.xlane.xlu0 %627
        %629 = vrot.lane.b32.xlu0 %v588, 40
        %v630 = vpop.permute.xlu0 %629
        %v633 = vsel %vm373, %v625, 0
        %635 = vmatpush.msra.mxu0 0.0
        %636 = vmatpush.msra.mxu0 0.0
        %637 = vmatpush.msra.mxu0 0.0
        %638 = vmatpush.msra.mxu0 0.0
        %639 = vmatpush.msra.mxu0 0.0
        %640 = vmatpush.msra.mxu0 0.0
        %641 = vmatpush.msra.mxu0 0.0
        %642 = vmatpush.msra.mxu0 0.0
        %643 = vmatpush.msra.mxu0 0.0
        %644 = vmatpush.msra.mxu0 0.0
        %645 = vmatpush.msra.mxu0 0.0
        %646 = vmatpush.msra.mxu0 0.0
        %647 = vmatpush.msra.mxu0 0.0
        %648 = vmatpush.msra.mxu0 0.0
        %649 = vmatpush.msra.mxu0 0.0
        %650 = vmatpush.msra.mxu0 %v630
        %651 = vmatmul.f32.gmra.mxu0 %v633
        %v652 = vpop.f32.mrf.mxu0
        %v653 = vadd.f32 0.0, %v652
        %654 = vdwg.mxu0
        %v655 = vrcp.pop %v628
        %v656 = vmul.f32 %v653, %v655
        %658 = vrot.lane.b32.xlu0 %v656, 24
        %v659 = vpop.permute.xlu0 %658
        %vm661 = vcmask 261312
        %662 = vst.msk [vmem:[#allocation3] sm:$0xff] %vm661, %v659
        %v663 = vld [vmem:[#allocation3] sm:$0xff]
        %v664 = vld [vmem:[#allocation8] sm:$0xff]
        %v665 = vld [vmem:[#allocation8 + $0x8] sm:$0xff]
        %v666 = vld [vmem:[#allocation8 + $0x10] sm:$0xff]
        %v667 = vld [vmem:[#allocation8 + $0x18] sm:$0xff]
        %v668 = vld [vmem:[%s4] sm:$0x1]
        %v670 = vperm.slane %v668, 0
        %v673 = vsel %vm338, %v663, 0
        %675 = vmatpush.msra.mxu0 0.0
        %676 = vmatpush.msra.mxu0 0.0
        %677 = vmatpush.msra.mxu0 0.0
        %678 = vmatpush.msra.mxu0 0.0
        %679 = vmatpush.msra.mxu0 0.0
        %680 = vmatpush.msra.mxu0 0.0
        %681 = vmatpush.msra.mxu0 0.0
        %682 = vmatpush.msra.mxu0 0.0
        %683 = vmatpush.msra.mxu0 0.0
        %684 = vmatpush.msra.mxu0 0.0
        %685 = vmatpush.msra.mxu0 0.0
        %686 = vmatpush.msra.mxu0 0.0
        %687 = vmatpush.msra.mxu0 %v667
        %688 = vmatpush.msra.mxu0 %v666
        %689 = vmatpush.msra.mxu0 %v665
        %690 = vmatpush.msra.mxu0 %v664
        %691 = vmatmul.f32.gmra.mxu0 %v673
        %v692 = vpop.f32.mrf.mxu0
        %v693 = vadd.f32 %v670, %v692
        %694 = vdwg.mxu0
        %v695 = vadd.f32 %v329, %v693
        %v696 = vsel %vm338, %v695, 0.0
        %697 = vadd.xlane.f32.xlu0 %v696
        %v698 = vpop.xlane.xlu0 %697
        %v699 = vrcp.pop 32.0
        %v700 = vmul.f32 32.0, %v699
        %v701 = vsub.f32 1.0, %v700
        %v702 = vmul.f32 %v699, %v701
        %v703 = vadd.f32 %v699, %v702
        %vm704 = vweird.f32 %v699
        %v705 = vsel %vm704, %v699, %v703
        %v706 = vmul.f32 %v698, %v705
        %v707 = vsub.f32 %v695, %v706
        %v708 = vmul.f32 %v707, %v707
        %v709 = vsel %vm338, %v708, 0.0
        %710 = vadd.xlane.f32.xlu0 %v709
        %v711 = vpop.xlane.xlu0 %710
        %v712 = vmul.f32 %v711, %v705
        %v713 = vadd.f32 %v712, 1e-05
        %v714 = vrsqrt.pop %v713
        %v715 = vmul.f32 %v714, %v713
        %v716 = vmul.f32 %v715, %v714
        %v717 = vmul.f32 0.5, %v716
        %v718 = vsub.f32 1.5, %v717
        %v719 = vmul.f32 %v714, %v718
        %vm720 = vweird.f32 %v713
        %vm721 = vweird.f32 %v714
        %vm722 = vmor %vm720, %vm721
        %v723 = vsel %vm722, %v714, %v719
        %v724 = vmul.f32 %v707, %v723
        %v725 = vld [vmem:[%s5] sm:$0x1]
        %v727 = vperm.slane %v725, 0
        %v729 = vmul.f32 %v724, %v727
        %v730 = vld [vmem:[%s6] sm:$0x1]
        %v732 = vperm.slane %v730, 0
        %v734 = vadd.f32 %v729, %v732
        %735 = vst.msk [vmem:[%s328] sm:$0xff] %vm338, %v734
        %p736 = scmp.lt.s32.totalorder %s22, 1
        %s737 = scalar_select %p736, %s22, 1
        %s738 = smul.addr %s737, 8
        %s739 = scalar_lea.vmem %s7, %s738
        // Predicated region
        $region61: #{decoder_layer_forward.3} parent=47 // pred_check
          %p740 = pneg %p192
        $region62: #{decoder_layer_forward.3} parent=47 // pred_check_branch
          %742 = sbr.rel (%p740) target = $region64
        $region63: #{decoder_layer_forward.3} parent=47 // pred_region
          _
        $region64: #{decoder_layer_forward.3} parent=47 // pred_fallthru
          _
      $region48: #{decoder_layer_forward.3} parent=5 // pred_fallthru
        _
      %p743 = scmp.le.s32.totalorder 2, %s17
      // Predicated region
      $region65: #{decoder_layer_forward.3} parent=5 // pred_check
        %p744 = pneg %p743
      $region66: #{decoder_layer_forward.3} parent=5 // pred_check_branch
        %746 = sbr.rel (%p744) target = $region68
      $region67: #{decoder_layer_forward.3} parent=5 // pred_region
        %s747 = ssub.s32 %s17, 2
        // Predicated region
        $region69: #{decoder_layer_forward.3} parent=67 // pred_check
          %p748 = pneg %p198
        $region70: #{decoder_layer_forward.3} parent=67 // pred_check_branch
          %750 = sbr.rel (%p748) target = $region72
        $region71: #{decoder_layer_forward.3} parent=67 // pred_region
          %p751 = scmp.lt.s32.totalorder %s23, 1
          %s752 = scalar_select %p751, %s23, 1
          %s753 = smul.addr %s752, 8
          %s754 = scalar_lea.vmem %s7, %s753
        $region72: #{decoder_layer_forward.3} parent=67 // pred_fallthru
          _
      $region68: #{decoder_layer_forward.3} parent=5 // pred_fallthru
        _
    $region6: #{decoder_layer_forward.3} parent=1 // loop_footer
      %s21 = sadd.s32 1, %s17
    $region7: #{decoder_layer_forward.3} parent=1 // loop_footer_branch
      %16 = sbr.rel target = $region3
    $region8: #{decoder_layer_forward.3} parent=1 // loop_exit
      _
    %755 = vsyncpa [#allocation5], 1
    %s756 = scalar_lea.sflag [#allocation5], 1
    %757 = vsyncpa %s756, 1
    %758 = vsyncpa [#allocation7], 1

// kernel: decoder_layer_forward.4
$region0: #{decoder_layer_forward.4}
  #allocation0 [shape = 'u32[]', space=smem, size = 0x4, offset = 0x4, fixed_abs, tag = 'smem constant byte address 0x4 - core index']
  #allocation1 [shape = 'u32[72,128]{1,0:T(1,128)}', space=vmem, size = 0x9000, scoped, tag = 'internal scratch']
  #allocation2 [shape = 'f32[8,32]{1,0:T(8,128)}', space=vmem, size = 0x1000, scoped, tag = 'scratch operand']
  #allocation3 [shape = 'f32[12,64]{1,0:T(8,128)}', space=vmem, size = 0x2000, scoped, tag = 'scratch operand']
  #allocation4 [shape = 'f32[8,32]{1,0:T(8,128)}', space=vmem, size = 0x1000, scoped, tag = 'scratch operand']
  %s0 = inlined_call_operand.vmem [shape: f32[2,8,32], index: 0, kind: input, shape index: {}]
  %s1 = inlined_call_operand.vmem [shape: f32[2,12,32], index: 1, kind: input, shape index: {}]
  %s2 = inlined_call_operand.vmem [shape: f32[32,32], index: 2, kind: input, shape index: {}]
  %s3 = inlined_call_operand.vmem [shape: f32[1,32], index: 3, kind: input, shape index: {}]
  %s4 = inlined_call_operand.hbm [shape: f32[32,64], index: 4, kind: input, shape index: {}]
  %s5 = inlined_call_operand.vmem [shape: f32[1,64], index: 5, kind: input, shape index: {}]
  %s6 = inlined_call_operand.hbm [shape: f32[32,32], index: 6, kind: input, shape index: {}]
  %s7 = inlined_call_operand.vmem [shape: f32[1,32], index: 7, kind: input, shape index: {}]
  %s8 = inlined_call_operand.vmem [shape: f32[1,32], index: 8, kind: input, shape index: {}]
  %s9 = inlined_call_operand.vmem [shape: f32[1,32], index: 9, kind: input, shape index: {}]
  %s10 = inlined_call_operand.vmem [shape: f32[2,8,32], index: 10, kind: output, shape index: {}]
  %s11 = sld [smem:[#allocation0]]
  $region81: #{decoder_layer_forward.4} parent=0
    _
  %s13 = ssub.s32 1, %s11
  %s14 = scalar_select 0, %s13, %s11
  $region1: #{decoder_layer_forward.4} parent=0
    #allocation5 [shape = 'u8[16384]{0}', space=vmem, size = 0x4000, scoped, tag = 'input window, operand 4, single buffered']
    #allocation6 [shape = 's32[2]{0}', space=sflag, size = 0x8, scoped, tag = 'scoped memory for decoder_layer_forward.4']
    #allocation7 [shape = 'u8[16384]{0}', space=vmem, size = 0x4000, scoped, tag = 'input window, operand 6, single buffered']
    #allocation8 [shape = 's32[1]{0}', space=sflag, size = 0x4, scoped, tag = 'scoped memory for decoder_layer_forward.4']
    %15 = vsyncpa [#allocation6], 0
    %16 = vsyncpa [#allocation8], 0
    loop: start=0, step=1, limit=4
    $region2: #{decoder_layer_forward.4} parent=1 // loop_pre_header
      _
    $region3: #{decoder_layer_forward.4} parent=1 // loop_header
      %s18 = sphi 0, %s22
      %p19 = scmp.ge.s32.totalorder %s18, 4
      %s28 = sphi 0, %s30
      %s31 = sphi 0, %s28
      %s32 = sphi 0, %s31
      %s48 = sphi 0, %s32
      %s54 = sphi 0, %s56
      %s57 = sphi 0, %s54
      %s58 = sphi 0, %s57
      %s74 = sphi 0, %s58
      %s78 = sphi 0, %s78
      %s80 = sphi 0, %s78
      %s81 = sphi 0, %s80
      %s95 = sphi 0, %s81
      %s99 = sphi 0, %s99
      %s101 = sphi 0, %s99
      %s102 = sphi 0, %s101
      %s116 = sphi 0, %s102
      %s120 = sphi 0, %s120
      %s122 = sphi 0, %s120
      %s123 = sphi 0, %s122
      %s137 = sphi 0, %s123
      %s141 = sphi 0, %s141
      %s143 = sphi 0, %s141
      %s144 = sphi 0, %s143
      %s158 = sphi 0, %s144
      %s162 = sphi 0, %s162
      %s164 = sphi 0, %s162
      %s165 = sphi 0, %s164
      %s179 = sphi 0, %s165
      %s183 = sphi 0, %s183
      %s185 = sphi 0, %s183
      %s186 = sphi 0, %s185
      %s200 = sphi 0, %s186
      %s204 = sphi 0, %s204
      %s206 = sphi 0, %s204
      %s207 = sphi 0, %s206
      %s221 = sphi 0, %s207
      %s225 = sphi 0, %s225
      %s227 = sphi 0, %s225
      %s228 = sphi 0, %s227
      %s242 = sphi 0, %s228
      %s248 = sphi 0, %s250
      %s251 = sphi 0, %s248
      %s252 = sphi 0, %s251
      %s268 = sphi 0, %s252
    $region4: #{decoder_layer_forward.4} parent=1 // loop_header_branch
      %21 = sbr.rel (%p19) target = $region8
    $region5: #{decoder_layer_forward.4} parent=1 // loop_body
      %s23 = ssub.s32 %s18, 1
      %s24 = ssub.s32 %s18, 2
      %s25 = sadd.s32 %s18, 1
      %s26 = ssub.s32 %s18, %s25
      %p27 = scmp.eq.s32.totalorder %s26, 0
      %s29 = sadd.s32 %s28, 1
      %s30 = scalar_select %p27, %s28, %s29
      %p33 = pneg %p27
      %p34 = scmp.eq.s32.totalorder %s18, 1
      %p35 = por %p33, %p34
      %p36 = scmp.ne.s32.totalorder %s28, %s31
      %p37 = scmp.eq.s32.totalorder %s18, 0
      %p38 = por %p36, %p37
      %p39 = scmp.ne.s32.totalorder %s28, %s31
      %p40 = scmp.eq.s32.totalorder %s23, 1
      %p41 = por %p39, %p40
      %p42 = scmp.ne.s32.totalorder %s31, %s32
      %p43 = scmp.eq.s32.totalorder %s23, 0
      %p44 = por %p42, %p43
      %p45 = scmp.ne.s32.totalorder %s31, %s32
      %p46 = scmp.eq.s32.totalorder %s24, 1
      %p47 = por %p45, %p46
      %p49 = scmp.ne.s32.totalorder %s32, %s48
      %p50 = scmp.eq.s32.totalorder %s24, 0
      %p51 = por %p49, %p50
      %s52 = ssub.s32 %s18, %s25
      %p53 = scmp.eq.s32.totalorder %s52, 0
      %s55 = sadd.s32 %s54, 1
      %s56 = scalar_select %p53, %s54, %s55
      %p59 = pneg %p53
      %p60 = scmp.eq.s32.totalorder %s18, 1
      %p61 = por %p59, %p60
      %p62 = scmp.ne.s32.totalorder %s54, %s57
      %p63 = scmp.eq.s32.totalorder %s18, 0
      %p64 = por %p62, %p63
      %p65 = scmp.ne.s32.totalorder %s54, %s57
      %p66 = scmp.eq.s32.totalorder %s23, 1
      %p67 = por %p65, %p66
      %p68 = scmp.ne.s32.totalorder %s57, %s58
      %p69 = scmp.eq.s32.totalorder %s23, 0
      %p70 = por %p68, %p69
      %p71 = scmp.ne.s32.totalorder %s57, %s58
      %p72 = scmp.eq.s32.totalorder %s24, 1
      %p73 = por %p71, %p72
      %p75 = scmp.ne.s32.totalorder %s58, %s74
      %p76 = scmp.eq.s32.totalorder %s24, 0
      %p77 = por %p75, %p76
      %s79 = sadd.s32 %s78, 1
      %p82 = scmp.eq.s32.totalorder %s18, 1
      %p83 = scmp.ne.s32.totalorder %s78, %s80
      %p84 = scmp.eq.s32.totalorder %s18, 0
      %p85 = por %p83, %p84
      %p86 = scmp.ne.s32.totalorder %s78, %s80
      %p87 = scmp.eq.s32.totalorder %s23, 1
      %p88 = por %p86, %p87
      %p89 = scmp.ne.s32.totalorder %s80, %s81
      %p90 = scmp.eq.s32.totalorder %s23, 0
      %p91 = por %p89, %p90
      %p92 = scmp.ne.s32.totalorder %s80, %s81
      %p93 = scmp.eq.s32.totalorder %s24, 1
      %p94 = por %p92, %p93
      %p96 = scmp.ne.s32.totalorder %s81, %s95
      %p97 = scmp.eq.s32.totalorder %s24, 0
      %p98 = por %p96, %p97
      %s100 = sadd.s32 %s99, 1
      %p103 = scmp.eq.s32.totalorder %s18, 1
      %p104 = scmp.ne.s32.totalorder %s99, %s101
      %p105 = scmp.eq.s32.totalorder %s18, 0
      %p106 = por %p104, %p105
      %p107 = scmp.ne.s32.totalorder %s99, %s101
      %p108 = scmp.eq.s32.totalorder %s23, 1
      %p109 = por %p107, %p108
      %p110 = scmp.ne.s32.totalorder %s101, %s102
      %p111 = scmp.eq.s32.totalorder %s23, 0
      %p112 = por %p110, %p111
      %p113 = scmp.ne.s32.totalorder %s101, %s102
      %p114 = scmp.eq.s32.totalorder %s24, 1
      %p115 = por %p113, %p114
      %p117 = scmp.ne.s32.totalorder %s102, %s116
      %p118 = scmp.eq.s32.totalorder %s24, 0
      %p119 = por %p117, %p118
      %s121 = sadd.s32 %s120, 1
      %p124 = scmp.eq.s32.totalorder %s18, 1
      %p125 = scmp.ne.s32.totalorder %s120, %s122
      %p126 = scmp.eq.s32.totalorder %s18, 0
      %p127 = por %p125, %p126
      %p128 = scmp.ne.s32.totalorder %s120, %s122
      %p129 = scmp.eq.s32.totalorder %s23, 1
      %p130 = por %p128, %p129
      %p131 = scmp.ne.s32.totalorder %s122, %s123
      %p132 = scmp.eq.s32.totalorder %s23, 0
      %p133 = por %p131, %p132
      %p134 = scmp.ne.s32.totalorder %s122, %s123
      %p135 = scmp.eq.s32.totalorder %s24, 1
      %p136 = por %p134, %p135
      %p138 = scmp.ne.s32.totalorder %s123, %s137
      %p139 = scmp.eq.s32.totalorder %s24, 0
      %p140 = por %p138, %p139
      %s142 = sadd.s32 %s141, 1
      %p145 = scmp.eq.s32.totalorder %s18, 1
      %p146 = scmp.ne.s32.totalorder %s141, %s143
      %p147 = scmp.eq.s32.totalorder %s18, 0
      %p148 = por %p146, %p147
      %p149 = scmp.ne.s32.totalorder %s141, %s143
      %p150 = scmp.eq.s32.totalorder %s23, 1
      %p151 = por %p149, %p150
      %p152 = scmp.ne.s32.totalorder %s143, %s144
      %p153 = scmp.eq.s32.totalorder %s23, 0
      %p154 = por %p152, %p153
      %p155 = scmp.ne.s32.totalorder %s143, %s144
      %p156 = scmp.eq.s32.totalorder %s24, 1
      %p157 = por %p155, %p156
      %p159 = scmp.ne.s32.totalorder %s144, %s158
      %p160 = scmp.eq.s32.totalorder %s24, 0
      %p161 = por %p159, %p160
      %s163 = sadd.s32 %s162, 1
      %p166 = scmp.eq.s32.totalorder %s18, 1
      %p167 = scmp.ne.s32.totalorder %s162, %s164
      %p168 = scmp.eq.s32.totalorder %s18, 0
      %p169 = por %p167, %p168
      %p170 = scmp.ne.s32.totalorder %s162, %s164
      %p171 = scmp.eq.s32.totalorder %s23, 1
      %p172 = por %p170, %p171
      %p173 = scmp.ne.s32.totalorder %s164, %s165
      %p174 = scmp.eq.s32.totalorder %s23, 0
      %p175 = por %p173, %p174
      %p176 = scmp.ne.s32.totalorder %s164, %s165
      %p177 = scmp.eq.s32.totalorder %s24, 1
      %p178 = por %p176, %p177
      %p180 = scmp.ne.s32.totalorder %s165, %s179
      %p181 = scmp.eq.s32.totalorder %s24, 0
      %p182 = por %p180, %p181
      %s184 = sadd.s32 %s183, 1
      %p187 = scmp.eq.s32.totalorder %s18, 1
      %p188 = scmp.ne.s32.totalorder %s183, %s185
      %p189 = scmp.eq.s32.totalorder %s18, 0
      %p190 = por %p188, %p189
      %p191 = scmp.ne.s32.totalorder %s183, %s185
      %p192 = scmp.eq.s32.totalorder %s23, 1
      %p193 = por %p191, %p192
      %p194 = scmp.ne.s32.totalorder %s185, %s186
      %p195 = scmp.eq.s32.totalorder %s23, 0
      %p196 = por %p194, %p195
      %p197 = scmp.ne.s32.totalorder %s185, %s186
      %p198 = scmp.eq.s32.totalorder %s24, 1
      %p199 = por %p197, %p198
      %p201 = scmp.ne.s32.totalorder %s186, %s200
      %p202 = scmp.eq.s32.totalorder %s24, 0
      %p203 = por %p201, %p202
      %s205 = sadd.s32 %s204, 1
      %p208 = scmp.eq.s32.totalorder %s18, 1
      %p209 = scmp.ne.s32.totalorder %s204, %s206
      %p210 = scmp.eq.s32.totalorder %s18, 0
      %p211 = por %p209, %p210
      %p212 = scmp.ne.s32.totalorder %s204, %s206
      %p213 = scmp.eq.s32.totalorder %s23, 1
      %p214 = por %p212, %p213
      %p215 = scmp.ne.s32.totalorder %s206, %s207
      %p216 = scmp.eq.s32.totalorder %s23, 0
      %p217 = por %p215, %p216
      %p218 = scmp.ne.s32.totalorder %s206, %s207
      %p219 = scmp.eq.s32.totalorder %s24, 1
      %p220 = por %p218, %p219
      %p222 = scmp.ne.s32.totalorder %s207, %s221
      %p223 = scmp.eq.s32.totalorder %s24, 0
      %p224 = por %p222, %p223
      %s226 = sadd.s32 %s225, 1
      %p229 = scmp.eq.s32.totalorder %s18, 1
      %p230 = scmp.ne.s32.totalorder %s225, %s227
      %p231 = scmp.eq.s32.totalorder %s18, 0
      %p232 = por %p230, %p231
      %p233 = scmp.ne.s32.totalorder %s225, %s227
      %p234 = scmp.eq.s32.totalorder %s23, 1
      %p235 = por %p233, %p234
      %p236 = scmp.ne.s32.totalorder %s227, %s228
      %p237 = scmp.eq.s32.totalorder %s23, 0
      %p238 = por %p236, %p237
      %p239 = scmp.ne.s32.totalorder %s227, %s228
      %p240 = scmp.eq.s32.totalorder %s24, 1
      %p241 = por %p239, %p240
      %p243 = scmp.ne.s32.totalorder %s228, %s242
      %p244 = scmp.eq.s32.totalorder %s24, 0
      %p245 = por %p243, %p244
      %s246 = ssub.s32 %s18, %s25
      %p247 = scmp.eq.s32.totalorder %s246, 0
      %s249 = sadd.s32 %s248, 1
      %s250 = scalar_select %p247, %s248, %s249
      %p253 = pneg %p247
      %p254 = scmp.eq.s32.totalorder %s18, 1
      %p255 = por %p253, %p254
      %p256 = scmp.ne.s32.totalorder %s248, %s251
      %p257 = scmp.eq.s32.totalorder %s18, 0
      %p258 = por %p256, %p257
      %p259 = scmp.ne.s32.totalorder %s248, %s251
      %p260 = scmp.eq.s32.totalorder %s23, 1
      %p261 = por %p259, %p260
      %p262 = scmp.ne.s32.totalorder %s251, %s252
      %p263 = scmp.eq.s32.totalorder %s23, 0
      %p264 = por %p262, %p263
      %p265 = scmp.ne.s32.totalorder %s251, %s252
      %p266 = scmp.eq.s32.totalorder %s24, 1
      %p267 = por %p265, %p266
      %p269 = scmp.ne.s32.totalorder %s252, %s268
      %p270 = scmp.eq.s32.totalorder %s24, 0
      %p271 = por %p269, %p270
      %p272 = scmp.le.s32.totalorder 1, %s18
      %p273 = scmp.lt.s32.totalorder %s18, 3
      %p274 = pnand %p272, %p273
      %p275 = pneg %p274
      // Predicated region
      $region9: #{decoder_layer_forward.4} parent=5 // pred_check
        _
      $region10: #{decoder_layer_forward.4} parent=5 // pred_check_branch
        %277 = sbr.rel (%p274) target = $region12
      $region11: #{decoder_layer_forward.4} parent=5 // pred_region
        %s278 = ssub.s32 %s18, 1
        // Predicated region
        $region13: #{decoder_layer_forward.4} parent=11 // pred_check
          %p279 = pneg %p91
        $region14: #{decoder_layer_forward.4} parent=11 // pred_check_branch
          %281 = sbr.rel (%p279) target = $region16
        $region15: #{decoder_layer_forward.4} parent=11 // pred_region
          _
        $region16: #{decoder_layer_forward.4} parent=11 // pred_fallthru
          _
        // Predicated region
        $region17: #{decoder_layer_forward.4} parent=11 // pred_check
          %p282 = pneg %p112
        $region18: #{decoder_layer_forward.4} parent=11 // pred_check_branch
          %284 = sbr.rel (%p282) target = $region20
        $region19: #{decoder_layer_forward.4} parent=11 // pred_region
          _
        $region20: #{decoder_layer_forward.4} parent=11 // pred_fallthru
          _
        // Predicated region
        $region21: #{decoder_layer_forward.4} parent=11 // pred_check
          %p285 = pneg %p133
        $region22: #{decoder_layer_forward.4} parent=11 // pred_check_branch
          %287 = sbr.rel (%p285) target = $region24
        $region23: #{decoder_layer_forward.4} parent=11 // pred_region
          %289 = vsyncadd [#allocation6], 0
          %s290 = sshll.u32 %s4, 4
          %s291 = int_to_ptr.hbm [resolvable:$true] %s290
          %s292 = sshll.u32 [#allocation5], 4
          %s293 = int_to_ptr.vmem [resolvable:$true] %s292
          %298 = dma.hbm_to_vmem [thread:$0]  %s291, 512, %s293, [#allocation6], 128, 128, 8
        $region24: #{decoder_layer_forward.4} parent=11 // pred_fallthru
          _
        // Predicated region
        $region25: #{decoder_layer_forward.4} parent=11 // pred_check
          %p299 = pneg %p154
        $region26: #{decoder_layer_forward.4} parent=11 // pred_check_branch
          %301 = sbr.rel (%p299) target = $region28
        $region27: #{decoder_layer_forward.4} parent=11 // pred_region
          _
        $region28: #{decoder_layer_forward.4} parent=11 // pred_fallthru
          _
        // Predicated region
        $region29: #{decoder_layer_forward.4} parent=11 // pred_check
          %p302 = pneg %p175
        $region30: #{decoder_layer_forward.4} parent=11 // pred_check_branch
          %304 = sbr.rel (%p302) target = $region32
        $region31: #{decoder_layer_forward.4} parent=11 // pred_region
          %306 = vsyncadd [#allocation8], 0
          %s307 = sshll.u32 %s6, 4
          %s308 = int_to_ptr.hbm [resolvable:$true] %s307
          %s309 = sshll.u32 [#allocation7], 4
          %s310 = int_to_ptr.vmem [resolvable:$true] %s309
          %315 = dma.hbm_to_vmem [thread:$0]  %s308, 512, %s310, [#allocation8], 128, 128, 8
        $region32: #{decoder_layer_forward.4} parent=11 // pred_fallthru
          _
        // Predicated region
        $region33: #{decoder_layer_forward.4} parent=11 // pred_check
          %p316 = pneg %p196
        $region34: #{decoder_layer_forward.4} parent=11 // pred_check_branch
          %318 = sbr.rel (%p316) target = $region36
        $region35: #{decoder_layer_forward.4} parent=11 // pred_region
          _
        $region36: #{decoder_layer_forward.4} parent=11 // pred_fallthru
          _
        // Predicated region
        $region37: #{decoder_layer_forward.4} parent=11 // pred_check
          %p319 = pneg %p217
        $region38: #{decoder_layer_forward.4} parent=11 // pred_check_branch
          %321 = sbr.rel (%p319) target = $region40
        $region39: #{decoder_layer_forward.4} parent=11 // pred_region
          _
        $region40: #{decoder_layer_forward.4} parent=11 // pred_fallthru
          _
        // Predicated region
        $region41: #{decoder_layer_forward.4} parent=11 // pred_check
          %p322 = pneg %p238
        $region42: #{decoder_layer_forward.4} parent=11 // pred_check_branch
          %324 = sbr.rel (%p322) target = $region44
        $region43: #{decoder_layer_forward.4} parent=11 // pred_region
          _
        $region44: #{decoder_layer_forward.4} parent=11 // pred_fallthru
          _
      $region12: #{decoder_layer_forward.4} parent=5 // pred_fallthru
        _
      %p325 = scmp.lt.s32.totalorder %s18, 2
      // Predicated region
      $region45: #{decoder_layer_forward.4} parent=5 // pred_check
        %p326 = pneg %p325
      $region46: #{decoder_layer_forward.4} parent=5 // pred_check_branch
        %328 = sbr.rel (%p326) target = $region48
      $region47: #{decoder_layer_forward.4} parent=5 // pred_region
        // Predicated region
        $region49: #{decoder_layer_forward.4} parent=47 // pred_check
          %p329 = pneg %p38
        $region50: #{decoder_layer_forward.4} parent=47 // pred_check_branch
          %331 = sbr.rel (%p329) target = $region52
        $region51: #{decoder_layer_forward.4} parent=47 // pred_region
          %p332 = scmp.lt.s32.totalorder %s18, 1
          %s333 = scalar_select %p332, %s18, 1
          %s334 = smul.addr %s333, 8
          %s335 = scalar_lea.vmem %s0, %s334
        $region52: #{decoder_layer_forward.4} parent=47 // pred_fallthru
          _
        // Predicated region
        $region53: #{decoder_layer_forward.4} parent=47 // pred_check
          %p336 = pneg %p64
        $region54: #{decoder_layer_forward.4} parent=47 // pred_check_branch
          %338 = sbr.rel (%p336) target = $region56
        $region55: #{decoder_layer_forward.4} parent=47 // pred_region
          %p339 = scmp.lt.s32.totalorder %s18, 1
          %s340 = scalar_select %p339, %s18, 1
          %s341 = smul.addr %s340, 2
          %s342 = smul.addr %s341, 8
          %s343 = scalar_lea.vmem %s1, %s342
        $region56: #{decoder_layer_forward.4} parent=47 // pred_fallthru
          _
      $region48: #{decoder_layer_forward.4} parent=5 // pred_fallthru
        _
      %p344 = scmp.le.s32.totalorder 1, %s18
      %p345 = scmp.lt.s32.totalorder %s18, 3
      %p346 = pnand %p344, %p345
      %p347 = pneg %p346
      // Predicated region
      $region57: #{decoder_layer_forward.4} parent=5 // pred_check
        _
      $region58: #{decoder_layer_forward.4} parent=5 // pred_check_branch
        %349 = sbr.rel (%p346) target = $region60
      $region59: #{decoder_layer_forward.4} parent=5 // pred_region
        %s350 = ssub.s32 %s18, 1
        // Predicated region
        $region61: #{decoder_layer_forward.4} parent=59 // pred_check
          %p351 = pneg %p133
        $region62: #{decoder_layer_forward.4} parent=59 // pred_check_branch
          %353 = sbr.rel (%p351) target = $region64
        $region63: #{decoder_layer_forward.4} parent=59 // pred_region
          %355 = dma.done [#allocation6], 512
        $region64: #{decoder_layer_forward.4} parent=59 // pred_fallthru
          _
        // Predicated region
        $region65: #{decoder_layer_forward.4} parent=59 // pred_check
          %p356 = pneg %p175
        $region66: #{decoder_layer_forward.4} parent=59 // pred_check_branch
          %358 = sbr.rel (%p356) target = $region68
        $region67: #{decoder_layer_forward.4} parent=59 // pred_region
          %360 = dma.done [#allocation8], 512
        $region68: #{decoder_layer_forward.4} parent=59 // pred_fallthru
          _
        %p361 = scmp.lt.s32.totalorder %s23, 1
        %s362 = scalar_select %p361, %s23, 1
        %s363 = smul.addr %s362, 8
        %s364 = scalar_lea.vmem %s0, %s363
        %p365 = pneg %p44
        %p366 = pneg %p41
        %p367 = scmp.lt.s32.totalorder %s23, 1
        %s368 = scalar_select %p367, %s23, 1
        %s369 = smul.addr %s368, 2
        %s370 = smul.addr %s369, 8
        %s371 = scalar_lea.vmem %s1, %s370
        %p372 = pneg %p70
        %p373 = pneg %p67
        %p374 = pneg %p91
        %p375 = pneg %p88
        %p376 = pneg %p112
        %p377 = pneg %p109
        %p378 = pneg %p133
        %p379 = pneg %p130
        %p380 = pneg %p154
        %p381 = pneg %p151
        %p382 = pneg %p175
        %p383 = pneg %p172
        %p384 = pneg %p196
        %p385 = pneg %p193
        %p386 = pneg %p217
        %p387 = pneg %p214
        %p388 = pneg %p238
        %p389 = pneg %p235
        %p390 = pneg %p264
        %p391 = pneg %p261
        %p392 = scmp.lt.s32.totalorder %s23, 1
        %s393 = scalar_select %p392, %s23, 1
        %s394 = smul.addr %s393, 8
        %s395 = scalar_lea.vmem %s10, %s394
        %p396 = scmp.lt.s32.totalorder %s23, 1
        %s397 = scalar_select %p396, %s23, 1
        %s398 = smul.addr %s397, 8
        %s399 = scalar_lea.vmem %s0, %s398
        %p400 = scmp.lt.s32.totalorder %s23, 1
        %s401 = scalar_select %p400, %s23, 1
        %s402 = smul.addr %s401, 2
        %s403 = smul.addr %s402, 8
        %s404 = scalar_lea.vmem %s1, %s403
        %p405 = scmp.lt.s32.totalorder %s23, 1
        %s406 = scalar_select %p405, %s23, 1
        %s407 = smul.addr %s406, 8
        %s408 = scalar_lea.vmem %s10, %s407
        %v409 = vld [vmem:[%s399] sm:$0xff]
        %v410 = vld [vmem:[%s404] sm:$0xff]
        %v411 = vld [vmem:[%s404 + $0x8] sm:$0xf]
        %v412 = vld [vmem:[%s2] sm:$0xff]
        %v413 = vld [vmem:[%s2 + $0x8] sm:$0xff]
        %v414 = vld [vmem:[%s2 + $0x10] sm:$0xff]
        %v415 = vld [vmem:[%s2 + $0x18] sm:$0xff]
        %v416 = vld [vmem:[%s3] sm:$0x1]
        %v418 = vperm.slane %v416, 0
        %vm420 = vcmask 261120
        %v422 = vsel %vm420, %v409, 0
        %424 = vmatpush.msra.mxu0 0.0
        %425 = vmatpush.msra.mxu0 0.0
        %426 = vmatpush.msra.mxu0 0.0
        %427 = vmatpush.msra.mxu0 0.0
        %428 = vmatpush.msra.mxu0 0.0
        %429 = vmatpush.msra.mxu0 0.0
        %430 = vmatpush.msra.mxu0 0.0
        %431 = vmatpush.msra.mxu0 0.0
        %432 = vmatpush.msra.mxu0 0.0
        %433 = vmatpush.msra.mxu0 0.0
        %434 = vmatpush.msra.mxu0 0.0
        %435 = vmatpush.msra.mxu0 0.0
        %436 = vmatpush.msra.mxu0 %v415
        %437 = vmatpush.msra.mxu0 %v414
        %438 = vmatpush.msra.mxu0 %v413
        %439 = vmatpush.msra.mxu0 %v412
        %440 = vmatmul.f32.gmra.mxu0 %v422
        %v441 = vpop.f32.mrf.mxu0
        %v442 = vadd.f32 %v418, %v441
        %443 = vdwg.mxu0
        %444 = vst.msk [vmem:[#allocation2] sm:$0xff] %vm420, %v442
        %v445 = vld [vmem:[#allocation5] sm:$0xff]
        %v446 = vld [vmem:[#allocation5 + $0x8] sm:$0xff]
        %v447 = vld [vmem:[#allocation5 + $0x10] sm:$0xff]
        %v448 = vld [vmem:[#allocation5 + $0x18] sm:$0xff]
        %v449 = vld [vmem:[%s5] sm:$0x1]
        %v451 = vperm.slane %v449, 0
        %v454 = vsel %vm420, %v410, 0
        %v457 = vsel %vm420, %v411, 0
        %459 = vmatpush.msra.mxu0 0.0
        %460 = vmatpush.msra.mxu0 0.0
        %461 = vmatpush.msra.mxu0 0.0
        %462 = vmatpush.msra.mxu0 0.0
        %463 = vmatpush.msra.mxu0 0.0
        %464 = vmatpush.msra.mxu0 0.0
        %465 = vmatpush.msra.mxu0 0.0
        %466 = vmatpush.msra.mxu0 0.0
        %467 = vmatpush.msra.mxu0 0.0
        %468 = vmatpush.msra.mxu0 0.0
        %469 = vmatpush.msra.mxu0 0.0
        %470 = vmatpush.msra.mxu0 0.0
        %471 = vmatpush.msra.mxu0 %v448
        %472 = vmatpush.msra.mxu0 %v447
        %473 = vmatpush.msra.mxu0 %v446
        %474 = vmatpush.msra.mxu0 %v445
        %475 = vmatmul.f32.gmra.mxu0 %v454
        %v476 = vpop.f32.mrf.mxu0
        %v477 = vadd.f32 %v451, %v476
        %478 = vmatmul.f32.gmra.mxu0 %v457
        %v479 = vpop.f32.mrf.mxu0
        %v480 = vadd.f32 %v451, %v479
        %481 = vdwg.mxu0
        %vm482 = vcmask 523264
        %483 = vst.msk [vmem:[#allocation3] sm:$0xff] %vm482, %v477
        %vm484 = vcmask 519168
        %485 = vst.msk [vmem:[#allocation3 + $0x8] sm:$0xf] %vm484, %v480
        %v486 = vld [vmem:[#allocation2] sm:$0xff]
        %v487 = vld [vmem:[#allocation3] sm:$0xff]
        %v488 = vld [vmem:[#allocation3 + $0x8] sm:$0xf]
        %vm489 = vcmask 64512
        %v491 = vsel %vm489, %v486, 0
        %v494 = vsel %vm489, %v487, 0
        %v497 = vsel %vm489, %v488, 0
        %499 = vmatpush.xpose.msra.mxu0 0.0
        %500 = vmatpush.xpose.msra.mxu0 0.0
        %501 = vmatpush.xpose.msra.mxu0 0.0
        %502 = vmatpush.xpose.msra.mxu0 0.0
        %503 = vmatpush.xpose.msra.mxu0 0.0
        %504 = vmatpush.xpose.msra.mxu0 0.0
        %505 = vmatpush.xpose.msra.mxu0 0.0
        %506 = vmatpush.xpose.msra.mxu0 0.0
        %507 = vmatpush.xpose.msra.mxu0 0.0
        %508 = vmatpush.xpose.msra.mxu0 0.0
        %509 = vmatpush.xpose.msra.mxu0 0.0
        %510 = vmatpush.xpose.msra.mxu0 0.0
        %511 = vmatpush.xpose.msra.mxu0 0.0
        %512 = vmatpush.xpose.msra.mxu0 0.0
        %513 = vmatpush.xpose.msra.mxu0 %v497
        %514 = vmatpush.xpose.msra.mxu0 %v494
        %515 = vmatmul.f32.gmra.mxu0 %v491
        %v516 = vpop.f32.mrf.mxu0
        %v517 = vadd.f32 0.0, %v516
        %518 = vdwg.mxu0
        %v519 = vmul.f32 %v517, 0.35355338
        %vm520 = vcmask 97280
        %v521 = vsel %vm520, %v519, -inf
        %522 = vmax.xlane.f32.xlu0 %v521
        %v523 = vpop.xlane.xlu0 %522
        %v524 = vsub.f32 %v519, %v523
        %v525 = vmul.f32 %v524, 1.442695
        %v526 = vpow.pop %v525
        %v527 = vsel %vm520, %v526, 0.0
        %528 = vadd.xlane.f32.xlu0 %v527
        %v529 = vpop.xlane.xlu0 %528
        %530 = vrot.lane.b32.xlu0 %v487, 96
        %v531 = vpop.permute.xlu0 %530
        %532 = vrot.lane.b32.xlu0 %v488, 96
        %v533 = vpop.permute.xlu0 %532
        %v536 = vsel %vm520, %v526, 0
        %vm538 = vcmask 1043456
        %v539 = vsel %vm538, %v533, 0
        %541 = vmatpush.msra.mxu0 0.0
        %542 = vmatpush.msra.mxu0 0.0
        %543 = vmatpush.msra.mxu0 0.0
        %544 = vmatpush.msra.mxu0 0.0
        %545 = vmatpush.msra.mxu0 0.0
        %546 = vmatpush.msra.mxu0 0.0
        %547 = vmatpush.msra.mxu0 0.0
        %548 = vmatpush.msra.mxu0 0.0
        %549 = vmatpush.msra.mxu0 0.0
        %550 = vmatpush.msra.mxu0 0.0
        %551 = vmatpush.msra.mxu0 0.0
        %552 = vmatpush.msra.mxu0 0.0
        %553 = vmatpush.msra.mxu0 0.0
        %554 = vmatpush.msra.mxu0 0.0
        %555 = vmatpush.msra.mxu0 %v539
        %556 = vmatpush.msra.mxu0 %v531
        %557 = vmatmul.f32.gmra.mxu0 %v536
        %v558 = vpop.f32.mrf.mxu0
        %v559 = vadd.f32 0.0, %v558
        %560 = vdwg.mxu0
        %v561 = vrcp.pop %v529
        %v562 = vmul.f32 %v559, %v561
        %563 = vst.msk [vmem:[#allocation4] sm:$0xff] %vm489, %v562
        %v564 = vld [vmem:[#allocation2] sm:$0xff]
        %v565 = vld [vmem:[#allocation3] sm:$0xff]
        %v566 = vld [vmem:[#allocation3 + $0x8] sm:$0xf]
        %568 = vrot.lane.b32.xlu0 %v564, 120
        %v569 = vpop.permute.xlu0 %568
        %572 = vrot.lane.b32.xlu0 %v565, 120
        %v573 = vpop.permute.xlu0 %572
        %574 = vrot.lane.b32.xlu0 %v566, 120
        %v575 = vpop.permute.xlu0 %574
        %v576 = vsel %vm489, %v569, 0
        %v578 = vsel %vm489, %v573, 0
        %v580 = vsel %vm489, %v575, 0
        %582 = vmatpush.xpose.msra.mxu0 0.0
        %583 = vmatpush.xpose.msra.mxu0 0.0
        %584 = vmatpush.xpose.msra.mxu0 0.0
        %585 = vmatpush.xpose.msra.mxu0 0.0
        %586 = vmatpush.xpose.msra.mxu0 0.0
        %587 = vmatpush.xpose.msra.mxu0 0.0
        %588 = vmatpush.xpose.msra.mxu0 0.0
        %589 = vmatpush.xpose.msra.mxu0 0.0
        %590 = vmatpush.xpose.msra.mxu0 0.0
        %591 = vmatpush.xpose.msra.mxu0 0.0
        %592 = vmatpush.xpose.msra.mxu0 0.0
        %593 = vmatpush.xpose.msra.mxu0 0.0
        %594 = vmatpush.xpose.msra.mxu0 0.0
        %595 = vmatpush.xpose.msra.mxu0 0.0
        %596 = vmatpush.xpose.msra.mxu0 %v580
        %597 = vmatpush.xpose.msra.mxu0 %v578
        %598 = vmatmul.f32.gmra.mxu0 %v576
        %v599 = vpop.f32.mrf.mxu0
        %v600 = vadd.f32 0.0, %v599
        %601 = vdwg.mxu0
        %v602 = vmul.f32 %v600, 0.35355338
        %v603 = vsel %vm520, %v602, -inf
        %604 = vmax.xlane.f32.xlu0 %v603
        %v605 = vpop.xlane.xlu0 %604
        %v606 = vsub.f32 %v602, %v605
        %v607 = vmul.f32 %v606, 1.442695
        %v608 = vpow.pop %v607
        %v609 = vsel %vm520, %v608, 0.0
        %610 = vadd.xlane.f32.xlu0 %v609
        %v611 = vpop.xlane.xlu0 %610
        %612 = vrot.lane.b32.xlu0 %v565, 88
        %v613 = vpop.permute.xlu0 %612
        %614 = vrot.lane.b32.xlu0 %v566, 88
        %v615 = vpop.permute.xlu0 %614
        %v618 = vsel %vm520, %v608, 0
        %v620 = vsel %vm538, %v615, 0
        %622 = vmatpush.msra.mxu0 0.0
        %623 = vmatpush.msra.mxu0 0.0
        %624 = vmatpush.msra.mxu0 0.0
        %625 = vmatpush.msra.mxu0 0.0
        %626 = vmatpush.msra.mxu0 0.0
        %627 = vmatpush.msra.mxu0 0.0
        %628 = vmatpush.msra.mxu0 0.0
        %629 = vmatpush.msra.mxu0 0.0
        %630 = vmatpush.msra.mxu0 0.0
        %631 = vmatpush.msra.mxu0 0.0
        %632 = vmatpush.msra.mxu0 0.0
        %633 = vmatpush.msra.mxu0 0.0
        %634 = vmatpush.msra.mxu0 0.0
        %635 = vmatpush.msra.mxu0 0.0
        %636 = vmatpush.msra.mxu0 %v620
        %637 = vmatpush.msra.mxu0 %v613
        %638 = vmatmul.f32.gmra.mxu0 %v618
        %v639 = vpop.f32.mrf.mxu0
        %v640 = vadd.f32 0.0, %v639
        %641 = vdwg.mxu0
        %v642 = vrcp.pop %v611
        %v643 = vmul.f32 %v640, %v642
        %645 = vrot.lane.b32.xlu0 %v643, 8
        %v646 = vpop.permute.xlu0 %645
        %vm648 = vcmask 130112
        %649 = vst.msk [vmem:[#allocation4] sm:$0xff] %vm648, %v646
        %v650 = vld [vmem:[#allocation2] sm:$0xff]
        %v651 = vld [vmem:[#allocation3] sm:$0xff]
        %v652 = vld [vmem:[#allocation3 + $0x8] sm:$0xf]
        %654 = vrot.lane.b32.xlu0 %v650, 112
        %v655 = vpop.permute.xlu0 %654
        %658 = vrot.lane.b32.xlu0 %v651, 112
        %v659 = vpop.permute.xlu0 %658
        %660 = vrot.lane.b32.xlu0 %v652, 112
        %v661 = vpop.permute.xlu0 %660
        %v662 = vsel %vm489, %v655, 0
        %v664 = vsel %vm489, %v659, 0
        %v666 = vsel %vm489, %v661, 0
        %668 = vmatpush.xpose.msra.mxu0 0.0
        %669 = vmatpush.xpose.msra.mxu0 0.0
        %670 = vmatpush.xpose.msra.mxu0 0.0
        %671 = vmatpush.xpose.msra.mxu0 0.0
        %672 = vmatpush.xpose.msra.mxu0 0.0
        %673 = vmatpush.xpose.msra.mxu0 0.0
        %674 = vmatpush.xpose.msra.mxu0 0.0
        %675 = vmatpush.xpose.msra.mxu0 0.0
        %676 = vmatpush.xpose.msra.mxu0 0.0
        %677 = vmatpush.xpose.msra.mxu0 0.0
        %678 = vmatpush.xpose.msra.mxu0 0.0
        %679 = vmatpush.xpose.msra.mxu0 0.0
        %680 = vmatpush.xpose.msra.mxu0 0.0
        %681 = vmatpush.xpose.msra.mxu0 0.0
        %682 = vmatpush.xpose.msra.mxu0 %v666
        %683 = vmatpush.xpose.msra.mxu0 %v664
        %684 = vmatmul.f32.gmra.mxu0 %v662
        %v685 = vpop.f32.mrf.mxu0
        %v686 = vadd.f32 0.0, %v685
        %687 = vdwg.mxu0
        %v688 = vmul.f32 %v686, 0.35355338
        %v689 = vsel %vm520, %v688, -inf
        %690 = vmax.xlane.f32.xlu0 %v689
        %v691 = vpop.xlane.xlu0 %690
        %v692 = vsub.f32 %v688, %v691
        %v693 = vmul.f32 %v692, 1.442695
        %v694 = vpow.pop %v693
        %v695 = vsel %vm520, %v694, 0.0
        %696 = vadd.xlane.f32.xlu0 %v695
        %v697 = vpop.xlane.xlu0 %696
        %698 = vrot.lane.b32.xlu0 %v651, 80
        %v699 = vpop.permute.xlu0 %698
        %700 = vrot.lane.b32.xlu0 %v652, 80
        %v701 = vpop.permute.xlu0 %700
        %v704 = vsel %vm520, %v694, 0
        %v706 = vsel %vm538, %v701, 0
        %708 = vmatpush.msra.mxu0 0.0
        %709 = vmatpush.msra.mxu0 0.0
        %710 = vmatpush.msra.mxu0 0.0
        %711 = vmatpush.msra.mxu0 0.0
        %712 = vmatpush.msra.mxu0 0.0
        %713 = vmatpush.msra.mxu0 0.0
        %714 = vmatpush.msra.mxu0 0.0
        %715 = vmatpush.msra.mxu0 0.0
        %716 = vmatpush.msra.mxu0 0.0
        %717 = vmatpush.msra.mxu0 0.0
        %718 = vmatpush.msra.mxu0 0.0
        %719 = vmatpush.msra.mxu0 0.0
        %720 = vmatpush.msra.mxu0 0.0
        %721 = vmatpush.msra.mxu0 0.0
        %722 = vmatpush.msra.mxu0 %v706
        %723 = vmatpush.msra.mxu0 %v699
        %724 = vmatmul.f32.gmra.mxu0 %v704
        %v725 = vpop.f32.mrf.mxu0
        %v726 = vadd.f32 0.0, %v725
        %727 = vdwg.mxu0
        %v728 = vrcp.pop %v697
        %v729 = vmul.f32 %v726, %v728
        %731 = vrot.lane.b32.xlu0 %v729, 16
        %v732 = vpop.permute.xlu0 %731
        %vm734 = vcmask 195712
        %735 = vst.msk [vmem:[#allocation4] sm:$0xff] %vm734, %v732
        %v736 = vld [vmem:[#allocation2] sm:$0xff]
        %v737 = vld [vmem:[#allocation3] sm:$0xff]
        %v738 = vld [vmem:[#allocation3 + $0x8] sm:$0xf]
        %740 = vrot.lane.b32.xlu0 %v736, 104
        %v741 = vpop.permute.xlu0 %740
        %744 = vrot.lane.b32.xlu0 %v737, 104
        %v745 = vpop.permute.xlu0 %744
        %746 = vrot.lane.b32.xlu0 %v738, 104
        %v747 = vpop.permute.xlu0 %746
        %v748 = vsel %vm489, %v741, 0
        %v750 = vsel %vm489, %v745, 0
        %v752 = vsel %vm489, %v747, 0
        %754 = vmatpush.xpose.msra.mxu0 0.0
        %755 = vmatpush.xpose.msra.mxu0 0.0
        %756 = vmatpush.xpose.msra.mxu0 0.0
        %757 = vmatpush.xpose.msra.mxu0 0.0
        %758 = vmatpush.xpose.msra.mxu0 0.0
        %759 = vmatpush.xpose.msra.mxu0 0.0
        %760 = vmatpush.xpose.msra.mxu0 0.0
        %761 = vmatpush.xpose.msra.mxu0 0.0
        %762 = vmatpush.xpose.msra.mxu0 0.0
        %763 = vmatpush.xpose.msra.mxu0 0.0
        %764 = vmatpush.xpose.msra.mxu0 0.0
        %765 = vmatpush.xpose.msra.mxu0 0.0
        %766 = vmatpush.xpose.msra.mxu0 0.0
        %767 = vmatpush.xpose.msra.mxu0 0.0
        %768 = vmatpush.xpose.msra.mxu0 %v752
        %769 = vmatpush.xpose.msra.mxu0 %v750
        %770 = vmatmul.f32.gmra.mxu0 %v748
        %v771 = vpop.f32.mrf.mxu0
        %v772 = vadd.f32 0.0, %v771
        %773 = vdwg.mxu0
        %v774 = vmul.f32 %v772, 0.35355338
        %v775 = vsel %vm520, %v774, -inf
        %776 = vmax.xlane.f32.xlu0 %v775
        %v777 = vpop.xlane.xlu0 %776
        %v778 = vsub.f32 %v774, %v777
        %v779 = vmul.f32 %v778, 1.442695
        %v780 = vpow.pop %v779
        %v781 = vsel %vm520, %v780, 0.0
        %782 = vadd.xlane.f32.xlu0 %v781
        %v783 = vpop.xlane.xlu0 %782
        %784 = vrot.lane.b32.xlu0 %v737, 72
        %v785 = vpop.permute.xlu0 %784
        %786 = vrot.lane.b32.xlu0 %v738, 72
        %v787 = vpop.permute.xlu0 %786
        %v790 = vsel %vm520, %v780, 0
        %v792 = vsel %vm538, %v787, 0
        %794 = vmatpush.msra.mxu0 0.0
        %795 = vmatpush.msra.mxu0 0.0
        %796 = vmatpush.msra.mxu0 0.0
        %797 = vmatpush.msra.mxu0 0.0
        %798 = vmatpush.msra.mxu0 0.0
        %799 = vmatpush.msra.mxu0 0.0
        %800 = vmatpush.msra.mxu0 0.0
        %801 = vmatpush.msra.mxu0 0.0
        %802 = vmatpush.msra.mxu0 0.0
        %803 = vmatpush.msra.mxu0 0.0
        %804 = vmatpush.msra.mxu0 0.0
        %805 = vmatpush.msra.mxu0 0.0
        %806 = vmatpush.msra.mxu0 0.0
        %807 = vmatpush.msra.mxu0 0.0
        %808 = vmatpush.msra.mxu0 %v792
        %809 = vmatpush.msra.mxu0 %v785
        %810 = vmatmul.f32.gmra.mxu0 %v790
        %v811 = vpop.f32.mrf.mxu0
        %v812 = vadd.f32 0.0, %v811
        %813 = vdwg.mxu0
        %v814 = vrcp.pop %v783
        %v815 = vmul.f32 %v812, %v814
        %817 = vrot.lane.b32.xlu0 %v815, 24
        %v818 = vpop.permute.xlu0 %817
        %vm820 = vcmask 261312
        %821 = vst.msk [vmem:[#allocation4] sm:$0xff] %vm820, %v818
        %v822 = vld [vmem:[#allocation4] sm:$0xff]
        %v823 = vld [vmem:[#allocation7] sm:$0xff]
        %v824 = vld [vmem:[#allocation7 + $0x8] sm:$0xff]
        %v825 = vld [vmem:[#allocation7 + $0x10] sm:$0xff]
        %v826 = vld [vmem:[#allocation7 + $0x18] sm:$0xff]
        %v827 = vld [vmem:[%s7] sm:$0x1]
        %v829 = vperm.slane %v827, 0
        %v832 = vsel %vm420, %v822, 0
        %834 = vmatpush.msra.mxu0 0.0
        %835 = vmatpush.msra.mxu0 0.0
        %836 = vmatpush.msra.mxu0 0.0
        %837 = vmatpush.msra.mxu0 0.0
        %838 = vmatpush.msra.mxu0 0.0
        %839 = vmatpush.msra.mxu0 0.0
        %840 = vmatpush.msra.mxu0 0.0
        %841 = vmatpush.msra.mxu0 0.0
        %842 = vmatpush.msra.mxu0 0.0
        %843 = vmatpush.msra.mxu0 0.0
        %844 = vmatpush.msra.mxu0 0.0
        %845 = vmatpush.msra.mxu0 0.0
        %846 = vmatpush.msra.mxu0 %v826
        %847 = vmatpush.msra.mxu0 %v825
        %848 = vmatpush.msra.mxu0 %v824
        %849 = vmatpush.msra.mxu0 %v823
        %850 = vmatmul.f32.gmra.mxu0 %v832
        %v851 = vpop.f32.mrf.mxu0
        %v852 = vadd.f32 %v829, %v851
        %853 = vdwg.mxu0
        %v854 = vadd.f32 %v409, %v852
        %v855 = vsel %vm420, %v854, 0.0
        %856 = vadd.xlane.f32.xlu0 %v855
        %v857 = vpop.xlane.xlu0 %856
        %v858 = vrcp.pop 32.0
        %v859 = vmul.f32 32.0, %v858
        %v860 = vsub.f32 1.0, %v859
        %v861 = vmul.f32 %v858, %v860
        %v862 = vadd.f32 %v858, %v861
        %vm863 = vweird.f32 %v858
        %v864 = vsel %vm863, %v858, %v862
        %v865 = vmul.f32 %v857, %v864
        %v866 = vsub.f32 %v854, %v865
        %v867 = vmul.f32 %v866, %v866
        %v868 = vsel %vm420, %v867, 0.0
        %869 = vadd.xlane.f32.xlu0 %v868
        %v870 = vpop.xlane.xlu0 %869
        %v871 = vmul.f32 %v870, %v864
        %v872 = vadd.f32 %v871, 1e-05
        %v873 = vrsqrt.pop %v872
        %v874 = vmul.f32 %v873, %v872
        %v875 = vmul.f32 %v874, %v873
        %v876 = vmul.f32 0.5, %v875
        %v877 = vsub.f32 1.5, %v876
        %v878 = vmul.f32 %v873, %v877
        %vm879 = vweird.f32 %v872
        %vm880 = vweird.f32 %v873
        %vm881 = vmor %vm879, %vm880
        %v882 = vsel %vm881, %v873, %v878
        %v883 = vmul.f32 %v866, %v882
        %v884 = vld [vmem:[%s8] sm:$0x1]
        %v886 = vperm.slane %v884, 0
        %v888 = vmul.f32 %v883, %v886
        %v889 = vld [vmem:[%s9] sm:$0x1]
        %v891 = vperm.slane %v889, 0
        %v893 = vadd.f32 %v888, %v891
        %894 = vst.msk [vmem:[%s408] sm:$0xff] %vm420, %v893
        %p895 = scmp.lt.s32.totalorder %s23, 1
        %s896 = scalar_select %p895, %s23, 1
        %s897 = smul.addr %s896, 8
        %s898 = scalar_lea.vmem %s10, %s897
        // Predicated region
        $region69: #{decoder_layer_forward.4} parent=59 // pred_check
          %p899 = pneg %p261
        $region70: #{decoder_layer_forward.4} parent=59 // pred_check_branch
          %901 = sbr.rel (%p899) target = $region72
        $region71: #{decoder_layer_forward.4} parent=59 // pred_region
          _
        $region72: #{decoder_layer_forward.4} parent=59 // pred_fallthru
          _
      $region60: #{decoder_layer_forward.4} parent=5 // pred_fallthru
        _
      %p902 = scmp.le.s32.totalorder 2, %s18
      // Predicated region
      $region73: #{decoder_layer_forward.4} parent=5 // pred_check
        %p903 = pneg %p902
      $region74: #{decoder_layer_forward.4} parent=5 // pred_check_branch
        %905 = sbr.rel (%p903) target = $region76
      $region75: #{decoder_layer_forward.4} parent=5 // pred_region
        %s906 = ssub.s32 %s18, 2
        // Predicated region
        $region77: #{decoder_layer_forward.4} parent=75 // pred_check
          %p907 = pneg %p267
        $region78: #{decoder_layer_forward.4} parent=75 // pred_check_branch
          %909 = sbr.rel (%p907) target = $region80
        $region79: #{decoder_layer_forward.4} parent=75 // pred_region
          %p910 = scmp.lt.s32.totalorder %s24, 1
          %s911 = scalar_select %p910, %s24, 1
          %s912 = smul.addr %s911, 8
          %s913 = scalar_lea.vmem %s10, %s912
        $region80: #{decoder_layer_forward.4} parent=75 // pred_fallthru
          _
      $region76: #{decoder_layer_forward.4} parent=5 // pred_fallthru
        _
    $region6: #{decoder_layer_forward.4} parent=1 // loop_footer
      %s22 = sadd.s32 1, %s18
    $region7: #{decoder_layer_forward.4} parent=1 // loop_footer_branch
      %17 = sbr.rel target = $region3
    $region8: #{decoder_layer_forward.4} parent=1 // loop_exit
      _
    %914 = vsyncpa [#allocation6], 1
    %s915 = scalar_lea.sflag [#allocation6], 1
    %916 = vsyncpa %s915, 1
    %917 = vsyncpa [#allocation8], 1

</llo_original>
